<compile_context>
chip_gen: v7x
topology: tpu7x:2x2x1
jax: 0.10.0
libtpu: 0.0.40
codegen_flags: <defaults>
</compile_context>

<pallas_src>
import functools

import numpy as np
import jax
import jax.numpy as jnp
from jax.experimental import pallas as pl
from jax.experimental.pallas import tpu as pltpu

KSZ = 5        # conv kernel size
STRIDE = 2
PAD = 2

COMPUTE_DTYPE = jnp.bfloat16            # MXU input dtype (accumulation is f32)
VMEM_LIMIT_BYTES = 32 * 1024 * 1024     # explicit; fits v7x (64 MiB) and v5e/v6e


def _round_up(x, m):
    return (x + m - 1) // m * m


def _gelu(x):
    # TODO(synk): PyTorch nn.GELU() default is the exact erf form; erf has no
    # guaranteed Mosaic lowering, so the tanh approximation is used here
    # (goes to the EUP slot; max abs error ~1e-3 vs exact GELU).
    c = 0.7978845608028654  # sqrt(2/pi)
    return 0.5 * x * (1.0 + jnp.tanh(c * (x + 0.044715 * x * x * x)))


# ----------------------------- Pallas kernels -------------------------------

def _conv1d_polyphase_kernel(xe_ref, xo_ref, w_ref, b_ref, o_ref, *, l_out):
    """One batch item of Conv1d(k=5, s=2, p=2) + bias + GELU.

    xe_ref: (Le, Cin)   even time samples of the zero-padded input
    xo_ref: (Lo, Cin)   odd  time samples
    w_ref:  (KSZ, Cin, Cout)  per-tap weight matrices
    b_ref:  (1, Cout)
    o_ref:  (l_out, Cout)

    out[t] = GELU(b + sum_k x_pad[2t + k] @ W_k)
           = GELU(b + xe[t]@W0 + xo[t]@W1 + xe[t+1]@W2 + xo[t+1]@W3 + xe[t+2]@W4)
    """
    acc = jnp.dot(xe_ref[pl.ds(0, l_out), :], w_ref[0],
                  preferred_element_type=jnp.float32)
    acc += jnp.dot(xo_ref[pl.ds(0, l_out), :], w_ref[1],
                   preferred_element_type=jnp.float32)
    acc += jnp.dot(xe_ref[pl.ds(1, l_out), :], w_ref[2],
                   preferred_element_type=jnp.float32)
    acc += jnp.dot(xo_ref[pl.ds(1, l_out), :], w_ref[3],
                   preferred_element_type=jnp.float32)
    acc += jnp.dot(xe_ref[pl.ds(2, l_out), :], w_ref[4],
                   preferred_element_type=jnp.float32)
    acc = acc + b_ref[...]
    o_ref[...] = _gelu(acc).astype(o_ref.dtype)


def _linear_kernel(x_ref, w_ref, b_ref, o_ref, acc_ref):
    """Tiled out = x @ w + b.  K (reduction) is the last grid axis; f32
    accumulator lives in VMEM scratch; bias-add epilogue only at k==last."""
    k = pl.program_id(2)

    @pl.when(k == 0)
    def _():
        acc_ref[...] = jnp.zeros_like(acc_ref)

    acc_ref[...] += jnp.dot(x_ref[...], w_ref[...],
                            preferred_element_type=jnp.float32)

    @pl.when(k == pl.num_programs(2) - 1)
    def _():
        o_ref[...] = (acc_ref[...] + b_ref[...]).astype(o_ref.dtype)


# ----------------------------- wrappers --------------------------------------

def conv1d_gelu(x_blc, w_taps, bias, *, out_dtype=COMPUTE_DTYPE):
    """Conv1d(k=5, s=2, p=2) + GELU, fused in Pallas.  x_blc: (B, L, Cin)."""
    x_blc = x_blc.astype(COMPUTE_DTYPE)
    B, L, C = x_blc.shape
    _, Cp, Cout = w_taps.shape
    if C < Cp:                              # zero-pad input channels to match
        x_blc = jnp.pad(x_blc, ((0, 0), (0, 0), (0, Cp - C)))

    l_out = (L + 2 * PAD - KSZ) // STRIDE + 1
    xp = jnp.pad(x_blc, ((0, 0), (PAD, PAD), (0, 0)))
    xe = xp[:, 0::2, :]                     # even-phase samples (B, Le, Cp)
    xo = xp[:, 1::2, :]                     # odd-phase samples  (B, Lo, Cp)
    le, lo = xe.shape[1], xo.shape[1]

    cost = pl.CostEstimate(
        flops=2 * B * l_out * Cp * KSZ * Cout,
        transcendentals=B * l_out * Cout,
        bytes_accessed=int(xe.size * 2 + xo.size * 2 + w_taps.size * 2
                           + bias.size * 4
                           + B * l_out * Cout * np.dtype(out_dtype).itemsize))

    return pl.pallas_call(
        functools.partial(_conv1d_polyphase_kernel, l_out=l_out),
        out_shape=jax.ShapeDtypeStruct((B, l_out, Cout), out_dtype),
        grid=(B,),
        in_specs=[
            pl.BlockSpec((None, le, Cp), lambda b: (b, 0, 0)),
            pl.BlockSpec((None, lo, Cp), lambda b: (b, 0, 0)),
            pl.BlockSpec((KSZ, Cp, Cout), lambda b: (0, 0, 0)),
            pl.BlockSpec((1, Cout), lambda b: (0, 0)),
        ],
        out_specs=pl.BlockSpec((None, l_out, Cout), lambda b: (b, 0, 0)),
        compiler_params=pltpu.CompilerParams(
            dimension_semantics=("parallel",),
            vmem_limit_bytes=VMEM_LIMIT_BYTES),
        cost_estimate=cost,
    )(xe, xo, w_taps, bias)


def _linear_kn_tiles(kd, n):
    tk = min(512, _round_up(kd, 128))
    kp = _round_up(kd, tk)
    np_ = _round_up(n, 128)
    tn = 256 if np_ % 256 == 0 else 128     # 128-wide N tiles stay v5e-friendly
    return tk, kp, tn, np_


def linear_bias(x, w_padded, b_padded, *, kd, n_out):
    """out = x @ W + b.  x: (M, kd) un-padded; W/b already padded to (Kp, Np)."""
    M = x.shape[0]
    kp, np_ = w_padded.shape
    tk, kp2, tn, np2 = _linear_kn_tiles(kd, n_out)
    assert (kp, np_) == (kp2, np2), ((kp, np_), (kp2, np2))

    tm = min(256, _round_up(M, 8))
    mp = _round_up(M, tm)
    xpad = jnp.pad(x, ((0, mp - M), (0, kp - kd))).astype(COMPUTE_DTYPE)

    grid = (mp // tm, np_ // tn, kp // tk)
    cost = pl.CostEstimate(
        flops=2 * mp * kp * np_,
        transcendentals=0,
        bytes_accessed=int(xpad.size * 2 + w_padded.size * 2
                           + b_padded.size * 4 + mp * np_ * 4))

    out = pl.pallas_call(
        _linear_kernel,
        out_shape=jax.ShapeDtypeStruct((mp, np_), jnp.float32),
        grid=grid,
        in_specs=[
            pl.BlockSpec((tm, tk), lambda i, j, k: (i, k)),
            pl.BlockSpec((tk, tn), lambda i, j, k: (k, j)),
            pl.BlockSpec((1, tn), lambda i, j, k: (0, j)),
        ],
        out_specs=pl.BlockSpec((tm, tn), lambda i, j, k: (i, j)),
        scratch_shapes=[pltpu.VMEM((tm, tn), jnp.float32)],
        compiler_params=pltpu.CompilerParams(
            dimension_semantics=("parallel", "parallel", "arbitrary"),
            vmem_limit_bytes=VMEM_LIMIT_BYTES),
        cost_estimate=cost,
    )(xpad, w_padded, b_padded)
    return out[:M, :n_out]


# ----------------------------- parameters ------------------------------------

def init_params(key, eeg_channels, c1, c2, clip_dim, subject_dim,
                num_subjects, flattened_size):
    """PyTorch-layout params (Conv1d: (out, in, K); Linear stored as (in, out))."""
    ks = jax.random.split(key, 7)
    return {
        "W1": jax.random.normal(ks[0], (c1, eeg_channels, KSZ), jnp.float32) * 0.1,
        "b1": jax.random.normal(ks[1], (c1,), jnp.float32) * 0.1,
        "W2": jax.random.normal(ks[2], (c2, c1, KSZ), jnp.float32) * 0.1,
        "b2": jax.random.normal(ks[3], (c2,), jnp.float32) * 0.1,
        "Wl": jax.random.normal(ks[4], (flattened_size, clip_dim + subject_dim),
                                jnp.float32) * 0.02,
        "bl": jax.random.normal(ks[5], (clip_dim + subject_dim,),
                                jnp.float32) * 0.02,
        "emb": jax.random.normal(ks[6], (num_subjects, subject_dim), jnp.float32),
    }


def prepare_params(params, eeg_timesteps):
    """One-time relayout of PyTorch params into kernel-ready form:
    conv weights -> per-tap (KSZ, Cin_pad8, Cout) bf16; the nn.Flatten
    channel-major permutation folded into Wl; Wl/bl zero-padded to the
    Linear tile multiples; all matmul weights cast to bf16."""
    c2 = params["W2"].shape[0]
    l1 = (eeg_timesteps + 2 * PAD - KSZ) // STRIDE + 1
    l2 = (l1 + 2 * PAD - KSZ) // STRIDE + 1
    kd = c2 * l2
    n_out = params["Wl"].shape[1]
    assert params["Wl"].shape[0] == kd, (params["Wl"].shape, kd)
    _, kp, _, np_ = _linear_kn_tiles(kd, n_out)

    def conv_taps(w):                       # (Cout, Cin, K) -> (K, Cin_pad8, Cout)
        t = jnp.transpose(w, (2, 1, 0))
        cin_p = _round_up(t.shape[1], 8)
        t = jnp.pad(t, ((0, 0), (0, cin_p - t.shape[1]), (0, 0)))
        return t.astype(COMPUTE_DTYPE)

    # Fold the (c2, L2) -> (L2, c2) flatten permutation into the Linear weight
    # so the conv2 output is consumed in its natural time-major layout.
    wl_perm = params["Wl"].reshape(c2, l2, n_out).transpose(1, 0, 2).reshape(kd, n_out)

    return {
        "W1": conv_taps(params["W1"]),
        "b1": params["b1"].reshape(1, -1).astype(jnp.float32),
        "W2": conv_taps(params["W2"]),
        "b2": params["b2"].reshape(1, -1).astype(jnp.float32),
        "Wl": jnp.pad(wl_perm, ((0, kp - kd), (0, np_ - n_out))).astype(COMPUTE_DTYPE),
        "bl": jnp.pad(params["bl"], (0, np_ - n_out)).reshape(1, np_).astype(jnp.float32),
        "emb": params["emb"].astype(jnp.float32),
    }


# ----------------------------- forward ----------------------------------------

def eeg_decomposer_forward(kparams, x, subject_ids=None, *, clip_dim):
    """x: (B, eeg_channels, eeg_timesteps) NCW, like the PyTorch module."""
    B = x.shape[0]
    subject_dim = kparams["emb"].shape[1]
    n_out = clip_dim + subject_dim

    xt = jnp.transpose(x, (0, 2, 1))                       # NCW -> (B, L, C), once
    h1 = conv1d_gelu(xt, kparams["W1"], kparams["b1"])     # (B, L1, c1) bf16
    h2 = conv1d_gelu(h1, kparams["W2"], kparams["b2"])     # (B, L2, c2) bf16

    _, l2, c2 = h2.shape
    flat = h2.reshape(B, l2 * c2)   # natural flatten; permutation folded into Wl

    E = linear_bias(flat, kparams["Wl"], kparams["bl"], kd=l2 * c2, n_out=n_out)
    Ec = E[:, :clip_dim]
    Esub = E[:, clip_dim:]

    if subject_ids is not None:
        # Plain gather: a standalone Pallas kernel for a (B, subject_dim)
        # lookup costs more in launch + DMA than the lookup itself.
        subject_emb = jnp.take(kparams["emb"], subject_ids.astype(jnp.int32), axis=0)
        return Ec, Esub, subject_emb
    return Ec, Esub


# ----------------------------- reference (plain JAX, f32) ---------------------

def reference_forward(params, x, subject_ids, *, clip_dim):
    def conv(z, w, b):
        y = jax.lax.conv_general_dilated(
            z, w, window_strides=(STRIDE,), padding=((PAD, PAD),),
            dimension_numbers=("NCH", "OIH", "NCH"))
        return jax.nn.gelu(y + b[None, :, None], approximate=True)

    h1 = conv(x, params["W1"], params["b1"])
    h2 = conv(h1, params["W2"], params["b2"])
    flat = h2.reshape(x.shape[0], -1)          # channel-major, like nn.Flatten
    E = flat @ params["Wl"] + params["bl"]
    return (E[:, :clip_dim], E[:, clip_dim:],
            jnp.take(params["emb"], subject_ids, axis=0))


if __name__ == "__main__":
    # Small shapes consistent with the module's forward.
    B = 2
    eeg_channels, eeg_timesteps = 8, 32
    c1, c2 = 16, 32                       # conv hidden sizes (128/256 in orig)
    clip_dim, subject_dim, num_subjects = 64, 32, 3

    l1 = (eeg_timesteps + 2 * PAD - KSZ) // STRIDE + 1     # 16
    l2 = (l1 + 2 * PAD - KSZ) // STRIDE + 1                # 8
    flattened_size = c2 * l2                               # analogue of 256*63

    root = jax.random.PRNGKey(0)
    kinit, kx = jax.random.split(root)
    params = init_params(kinit, eeg_channels, c1, c2, clip_dim, subject_dim,
                         num_subjects, flattened_size)
    kparams = prepare_params(params, eeg_timesteps)        # one-time relayout

    x = jax.random.normal(kx, (B, eeg_channels, eeg_timesteps), jnp.float32)
    subject_ids = jnp.array([0, 2], dtype=jnp.int32)

    fwd = jax.jit(functools.partial(eeg_decomposer_forward, clip_dim=clip_dim))
    Ec, Esub, subject_emb = fwd(kparams, x, subject_ids)
    jax.block_until_ready((Ec, Esub, subject_emb))

    assert Ec.shape == (B, clip_dim)
    assert Esub.shape == (B, subject_dim)
    assert subject_emb.shape == (B, subject_dim)

    # Correctness vs a plain-JAX f32 reference (kernels use bf16 MXU inputs).
    Ec_r, Esub_r, emb_r = reference_forward(params, x, subject_ids, clip_dim=clip_dim)
    assert jnp.allclose(Ec, Ec_r, atol=1e-1, rtol=1e-1), \
        float(jnp.max(jnp.abs(Ec - Ec_r)))
    assert jnp.allclose(Esub, Esub_r, atol=1e-1, rtol=1e-1), \
        float(jnp.max(jnp.abs(Esub - Esub_r)))
    assert jnp.allclose(subject_emb, emb_r)

    print("KERNEL_OK")
</pallas_src>

<mosaic_0001>
module attributes {stable_mosaic.version = 11 : i64} {
  func.func @_conv1d_polyphase_kernel(%arg0: i32, %arg1: memref<1x18x8xbf16, #tpu.memory_space<vmem>>, %arg2: memref<1x18x8xbf16, #tpu.memory_space<vmem>>, %arg3: memref<5x8x16xbf16, #tpu.memory_space<vmem>>, %arg4: memref<1x16xf32, #tpu.memory_space<vmem>>, %arg5: memref<1x16x16xbf16, #tpu.memory_space<vmem>>) attributes {dimension_semantics = [#tpu.dimension_semantics<parallel>], iteration_bounds = array<i64: 2>, scalar_prefetch = 0 : i64, scratch_operands = 0 : i64, tpu.core_type = #tpu.core_type<tc>, window_params = [{transform_indices = @transform_0, window_bounds = array<i64: 1, 18, 8>}, {transform_indices = @transform_1, window_bounds = array<i64: 1, 18, 8>}, {pipeline_mode = #tpu.pipeline_mode<synchronous>, transform_indices = @transform_2, window_bounds = array<i64: 5, 8, 16>}, {pipeline_mode = #tpu.pipeline_mode<synchronous>, transform_indices = @transform_3, window_bounds = array<i64: 1, 16>}, {transform_indices = @transform_4, window_bounds = array<i64: 1, 16, 16>}]} {
    %c0 = arith.constant 0 : index
    %c0_0 = arith.constant 0 : index
    %c0_1 = arith.constant 0 : index
    %0 = vector.load %arg1[%c0, %c0_0, %c0_1] : memref<1x18x8xbf16, #tpu.memory_space<vmem>>, vector<1x16x8xbf16>
    %1 = vector.shape_cast %0 : vector<1x16x8xbf16> to vector<16x8xbf16>
    %c0_2 = arith.constant 0 : index
    %c0_3 = arith.constant 0 : index
    %c0_4 = arith.constant 0 : index
    %2 = vector.load %arg3[%c0_2, %c0_3, %c0_4] : memref<5x8x16xbf16, #tpu.memory_space<vmem>>, vector<1x8x16xbf16>
    %3 = vector.shape_cast %2 : vector<1x8x16xbf16> to vector<8x16xbf16>
    %cst = arith.constant dense<0.000000e+00> : vector<16x16xf32>
    %4 = tpu.matmul %1, %3, %cst {dimension_numbers = #tpu.dot_dimension_numbers<[1], [0], [0], [1], [0, 0, 1, 1], [], []>} : vector<16x8xbf16>, vector<8x16xbf16>, vector<16x16xf32> -> vector<16x16xf32>
    %c0_5 = arith.constant 0 : index
    %c0_6 = arith.constant 0 : index
    %c0_7 = arith.constant 0 : index
    %5 = vector.load %arg2[%c0_5, %c0_6, %c0_7] : memref<1x18x8xbf16, #tpu.memory_space<vmem>>, vector<1x16x8xbf16>
    %6 = vector.shape_cast %5 : vector<1x16x8xbf16> to vector<16x8xbf16>
    %c1 = arith.constant 1 : index
    %c0_8 = arith.constant 0 : index
    %c0_9 = arith.constant 0 : index
    %7 = vector.load %arg3[%c1, %c0_8, %c0_9] : memref<5x8x16xbf16, #tpu.memory_space<vmem>>, vector<1x8x16xbf16>
    %8 = vector.shape_cast %7 : vector<1x8x16xbf16> to vector<8x16xbf16>
    %cst_10 = arith.constant dense<0.000000e+00> : vector<16x16xf32>
    %9 = tpu.matmul %6, %8, %cst_10 {dimension_numbers = #tpu.dot_dimension_numbers<[1], [0], [0], [1], [0, 0, 1, 1], [], []>} : vector<16x8xbf16>, vector<8x16xbf16>, vector<16x16xf32> -> vector<16x16xf32>
    %10 = arith.addf %4, %9 : vector<16x16xf32>
    %c0_11 = arith.constant 0 : index
    %c1_12 = arith.constant 1 : index
    %c0_13 = arith.constant 0 : index
    %11 = vector.load %arg1[%c0_11, %c1_12, %c0_13] : memref<1x18x8xbf16, #tpu.memory_space<vmem>>, vector<1x16x8xbf16>
    %12 = vector.shape_cast %11 : vector<1x16x8xbf16> to vector<16x8xbf16>
    %c2 = arith.constant 2 : index
    %c0_14 = arith.constant 0 : index
    %c0_15 = arith.constant 0 : index
    %13 = vector.load %arg3[%c2, %c0_14, %c0_15] : memref<5x8x16xbf16, #tpu.memory_space<vmem>>, vector<1x8x16xbf16>
    %14 = vector.shape_cast %13 : vector<1x8x16xbf16> to vector<8x16xbf16>
    %cst_16 = arith.constant dense<0.000000e+00> : vector<16x16xf32>
    %15 = tpu.matmul %12, %14, %cst_16 {dimension_numbers = #tpu.dot_dimension_numbers<[1], [0], [0], [1], [0, 0, 1, 1], [], []>} : vector<16x8xbf16>, vector<8x16xbf16>, vector<16x16xf32> -> vector<16x16xf32>
    %16 = arith.addf %10, %15 : vector<16x16xf32>
    %c0_17 = arith.constant 0 : index
    %c1_18 = arith.constant 1 : index
    %c0_19 = arith.constant 0 : index
    %17 = vector.load %arg2[%c0_17, %c1_18, %c0_19] : memref<1x18x8xbf16, #tpu.memory_space<vmem>>, vector<1x16x8xbf16>
    %18 = vector.shape_cast %17 : vector<1x16x8xbf16> to vector<16x8xbf16>
    %c3 = arith.constant 3 : index
    %c0_20 = arith.constant 0 : index
    %c0_21 = arith.constant 0 : index
    %19 = vector.load %arg3[%c3, %c0_20, %c0_21] : memref<5x8x16xbf16, #tpu.memory_space<vmem>>, vector<1x8x16xbf16>
    %20 = vector.shape_cast %19 : vector<1x8x16xbf16> to vector<8x16xbf16>
    %cst_22 = arith.constant dense<0.000000e+00> : vector<16x16xf32>
    %21 = tpu.matmul %18, %20, %cst_22 {dimension_numbers = #tpu.dot_dimension_numbers<[1], [0], [0], [1], [0, 0, 1, 1], [], []>} : vector<16x8xbf16>, vector<8x16xbf16>, vector<16x16xf32> -> vector<16x16xf32>
    %22 = arith.addf %16, %21 : vector<16x16xf32>
    %c0_23 = arith.constant 0 : index
    %c2_24 = arith.constant 2 : index
    %c0_25 = arith.constant 0 : index
    %23 = vector.load %arg1[%c0_23, %c2_24, %c0_25] : memref<1x18x8xbf16, #tpu.memory_space<vmem>>, vector<1x16x8xbf16>
    %24 = vector.shape_cast %23 : vector<1x16x8xbf16> to vector<16x8xbf16>
    %c4 = arith.constant 4 : index
    %c0_26 = arith.constant 0 : index
    %c0_27 = arith.constant 0 : index
    %25 = vector.load %arg3[%c4, %c0_26, %c0_27] : memref<5x8x16xbf16, #tpu.memory_space<vmem>>, vector<1x8x16xbf16>
    %26 = vector.shape_cast %25 : vector<1x8x16xbf16> to vector<8x16xbf16>
    %cst_28 = arith.constant dense<0.000000e+00> : vector<16x16xf32>
    %27 = tpu.matmul %24, %26, %cst_28 {dimension_numbers = #tpu.dot_dimension_numbers<[1], [0], [0], [1], [0, 0, 1, 1], [], []>} : vector<16x8xbf16>, vector<8x16xbf16>, vector<16x16xf32> -> vector<16x16xf32>
    %28 = arith.addf %22, %27 : vector<16x16xf32>
    %c0_29 = arith.constant 0 : index
    %c0_30 = arith.constant 0 : index
    %29 = vector.load %arg4[%c0_29, %c0_30] : memref<1x16xf32, #tpu.memory_space<vmem>>, vector<1x16xf32>
    %30 = vector.broadcast %29 : vector<1x16xf32> to vector<16x16xf32>
    %31 = arith.addf %28, %30 : vector<16x16xf32>
    %cst_31 = arith.constant 5.000000e-01 : f32
    %32 = vector.broadcast %cst_31 : f32 to vector<16x16xf32>
    %33 = arith.mulf %32, %31 : vector<16x16xf32>
    %cst_32 = arith.constant 4.471500e-02 : f32
    %34 = vector.broadcast %cst_32 : f32 to vector<16x16xf32>
    %35 = arith.mulf %34, %31 : vector<16x16xf32>
    %36 = arith.mulf %35, %31 : vector<16x16xf32>
    %37 = arith.mulf %36, %31 : vector<16x16xf32>
    %38 = arith.addf %31, %37 : vector<16x16xf32>
    %cst_33 = arith.constant 0.797884583 : f32
    %39 = vector.broadcast %cst_33 : f32 to vector<16x16xf32>
    %40 = arith.mulf %39, %38 : vector<16x16xf32>
    %41 = math.tanh %40 : vector<16x16xf32>
    %cst_34 = arith.constant 1.000000e+00 : f32
    %42 = vector.broadcast %cst_34 : f32 to vector<16x16xf32>
    %43 = arith.addf %42, %41 : vector<16x16xf32>
    %44 = arith.mulf %33, %43 : vector<16x16xf32>
    %45 = arith.truncf %44 : vector<16x16xf32> to vector<16x16xbf16>
    %c0_35 = arith.constant 0 : index
    %c0_36 = arith.constant 0 : index
    %c0_37 = arith.constant 0 : index
    %46 = vector.load %arg5[%c0_35, %c0_36, %c0_37] : memref<1x16x16xbf16, #tpu.memory_space<vmem>>, vector<1x16x16xbf16>
    %47 = vector.shape_cast %46 : vector<1x16x16xbf16> to vector<16x16xbf16>
    %48 = vector.shape_cast %45 : vector<16x16xbf16> to vector<1x16x16xbf16>
    tpu.vector_store %arg5[%c0_35, %c0_36, %c0_37], %48 {strides = array<i32>} : memref<1x16x16xbf16, #tpu.memory_space<vmem>>, vector<1x16x16xbf16>,
    return
  }
  func.func @transform_0(%arg0: i32) -> (i32, i32, i32) {
    %c0_i32 = arith.constant 0 : i32
    %c0_i32_0 = arith.constant 0 : i32
    %c0_i32_1 = arith.constant 0 : i32
    return %arg0, %c0_i32, %c0_i32_0 : i32, i32, i32
  }
  func.func @transform_1(%arg0: i32) -> (i32, i32, i32) {
    %c0_i32 = arith.constant 0 : i32
    %c0_i32_0 = arith.constant 0 : i32
    %c0_i32_1 = arith.constant 0 : i32
    return %arg0, %c0_i32, %c0_i32_0 : i32, i32, i32
  }
  func.func @transform_2(%arg0: i32) -> (i32, i32, i32) {
    %c0_i32 = arith.constant 0 : i32
    %c0_i32_0 = arith.constant 0 : i32
    %c0_i32_1 = arith.constant 0 : i32
    %c0_i32_2 = arith.constant 0 : i32
    return %c0_i32, %c0_i32_0, %c0_i32_1 : i32, i32, i32
  }
  func.func @transform_3(%arg0: i32) -> (i32, i32) {
    %c0_i32 = arith.constant 0 : i32
    %c0_i32_0 = arith.constant 0 : i32
    %c0_i32_1 = arith.constant 0 : i32
    return %c0_i32, %c0_i32_0 : i32, i32
  }
  func.func @transform_4(%arg0: i32) -> (i32, i32, i32) {
    %c0_i32 = arith.constant 0 : i32
    %c0_i32_0 = arith.constant 0 : i32
    %c0_i32_1 = arith.constant 0 : i32
    return %arg0, %c0_i32, %c0_i32_0 : i32, i32, i32
  }
}

module attributes {stable_mosaic.version = 11 : i64} {
  func.func @_conv1d_polyphase_kernel(%arg0: i32, %arg1: memref<1x10x16xbf16, #tpu.memory_space<vmem>>, %arg2: memref<1x10x16xbf16, #tpu.memory_space<vmem>>, %arg3: memref<5x16x32xbf16, #tpu.memory_space<vmem>>, %arg4: memref<1x32xf32, #tpu.memory_space<vmem>>, %arg5: memref<1x8x32xbf16, #tpu.memory_space<vmem>>) attributes {dimension_semantics = [#tpu.dimension_semantics<parallel>], iteration_bounds = array<i64: 2>, scalar_prefetch = 0 : i64, scratch_operands = 0 : i64, tpu.core_type = #tpu.core_type<tc>, window_params = [{transform_indices = @transform_0, window_bounds = array<i64: 1, 10, 16>}, {transform_indices = @transform_1, window_bounds = array<i64: 1, 10, 16>}, {pipeline_mode = #tpu.pipeline_mode<synchronous>, transform_indices = @transform_2, window_bounds = array<i64: 5, 16, 32>}, {pipeline_mode = #tpu.pipeline_mode<synchronous>, transform_indices = @transform_3, window_bounds = array<i64: 1, 32>}, {transform_indices = @transform_4, window_bounds = array<i64: 1, 8, 32>}]} {
    %c0 = arith.constant 0 : index
    %c0_0 = arith.constant 0 : index
    %c0_1 = arith.constant 0 : index
    %0 = vector.load %arg1[%c0, %c0_0, %c0_1] : memref<1x10x16xbf16, #tpu.memory_space<vmem>>, vector<1x8x16xbf16>
    %1 = vector.shape_cast %0 : vector<1x8x16xbf16> to vector<8x16xbf16>
    %c0_2 = arith.constant 0 : index
    %c0_3 = arith.constant 0 : index
    %c0_4 = arith.constant 0 : index
    %2 = vector.load %arg3[%c0_2, %c0_3, %c0_4] : memref<5x16x32xbf16, #tpu.memory_space<vmem>>, vector<1x16x32xbf16>
    %3 = vector.shape_cast %2 : vector<1x16x32xbf16> to vector<16x32xbf16>
    %cst = arith.constant dense<0.000000e+00> : vector<8x32xf32>
    %4 = tpu.matmul %1, %3, %cst {dimension_numbers = #tpu.dot_dimension_numbers<[1], [0], [0], [1], [0, 0, 1, 1], [], []>} : vector<8x16xbf16>, vector<16x32xbf16>, vector<8x32xf32> -> vector<8x32xf32>
    %c0_5 = arith.constant 0 : index
    %c0_6 = arith.constant 0 : index
    %c0_7 = arith.constant 0 : index
    %5 = vector.load %arg2[%c0_5, %c0_6, %c0_7] : memref<1x10x16xbf16, #tpu.memory_space<vmem>>, vector<1x8x16xbf16>
    %6 = vector.shape_cast %5 : vector<1x8x16xbf16> to vector<8x16xbf16>
    %c1 = arith.constant 1 : index
    %c0_8 = arith.constant 0 : index
    %c0_9 = arith.constant 0 : index
    %7 = vector.load %arg3[%c1, %c0_8, %c0_9] : memref<5x16x32xbf16, #tpu.memory_space<vmem>>, vector<1x16x32xbf16>
    %8 = vector.shape_cast %7 : vector<1x16x32xbf16> to vector<16x32xbf16>
    %cst_10 = arith.constant dense<0.000000e+00> : vector<8x32xf32>
    %9 = tpu.matmul %6, %8, %cst_10 {dimension_numbers = #tpu.dot_dimension_numbers<[1], [0], [0], [1], [0, 0, 1, 1], [], []>} : vector<8x16xbf16>, vector<16x32xbf16>, vector<8x32xf32> -> vector<8x32xf32>
    %10 = arith.addf %4, %9 : vector<8x32xf32>
    %c0_11 = arith.constant 0 : index
    %c1_12 = arith.constant 1 : index
    %c0_13 = arith.constant 0 : index
    %11 = vector.load %arg1[%c0_11, %c1_12, %c0_13] : memref<1x10x16xbf16, #tpu.memory_space<vmem>>, vector<1x8x16xbf16>
    %12 = vector.shape_cast %11 : vector<1x8x16xbf16> to vector<8x16xbf16>
    %c2 = arith.constant 2 : index
    %c0_14 = arith.constant 0 : index
    %c0_15 = arith.constant 0 : index
    %13 = vector.load %arg3[%c2, %c0_14, %c0_15] : memref<5x16x32xbf16, #tpu.memory_space<vmem>>, vector<1x16x32xbf16>
    %14 = vector.shape_cast %13 : vector<1x16x32xbf16> to vector<16x32xbf16>
    %cst_16 = arith.constant dense<0.000000e+00> : vector<8x32xf32>
    %15 = tpu.matmul %12, %14, %cst_16 {dimension_numbers = #tpu.dot_dimension_numbers<[1], [0], [0], [1], [0, 0, 1, 1], [], []>} : vector<8x16xbf16>, vector<16x32xbf16>, vector<8x32xf32> -> vector<8x32xf32>
    %16 = arith.addf %10, %15 : vector<8x32xf32>
    %c0_17 = arith.constant 0 : index
    %c1_18 = arith.constant 1 : index
    %c0_19 = arith.constant 0 : index
    %17 = vector.load %arg2[%c0_17, %c1_18, %c0_19] : memref<1x10x16xbf16, #tpu.memory_space<vmem>>, vector<1x8x16xbf16>
    %18 = vector.shape_cast %17 : vector<1x8x16xbf16> to vector<8x16xbf16>
    %c3 = arith.constant 3 : index
    %c0_20 = arith.constant 0 : index
    %c0_21 = arith.constant 0 : index
    %19 = vector.load %arg3[%c3, %c0_20, %c0_21] : memref<5x16x32xbf16, #tpu.memory_space<vmem>>, vector<1x16x32xbf16>
    %20 = vector.shape_cast %19 : vector<1x16x32xbf16> to vector<16x32xbf16>
    %cst_22 = arith.constant dense<0.000000e+00> : vector<8x32xf32>
    %21 = tpu.matmul %18, %20, %cst_22 {dimension_numbers = #tpu.dot_dimension_numbers<[1], [0], [0], [1], [0, 0, 1, 1], [], []>} : vector<8x16xbf16>, vector<16x32xbf16>, vector<8x32xf32> -> vector<8x32xf32>
    %22 = arith.addf %16, %21 : vector<8x32xf32>
    %c0_23 = arith.constant 0 : index
    %c2_24 = arith.constant 2 : index
    %c0_25 = arith.constant 0 : index
    %23 = vector.load %arg1[%c0_23, %c2_24, %c0_25] : memref<1x10x16xbf16, #tpu.memory_space<vmem>>, vector<1x8x16xbf16>
    %24 = vector.shape_cast %23 : vector<1x8x16xbf16> to vector<8x16xbf16>
    %c4 = arith.constant 4 : index
    %c0_26 = arith.constant 0 : index
    %c0_27 = arith.constant 0 : index
    %25 = vector.load %arg3[%c4, %c0_26, %c0_27] : memref<5x16x32xbf16, #tpu.memory_space<vmem>>, vector<1x16x32xbf16>
    %26 = vector.shape_cast %25 : vector<1x16x32xbf16> to vector<16x32xbf16>
    %cst_28 = arith.constant dense<0.000000e+00> : vector<8x32xf32>
    %27 = tpu.matmul %24, %26, %cst_28 {dimension_numbers = #tpu.dot_dimension_numbers<[1], [0], [0], [1], [0, 0, 1, 1], [], []>} : vector<8x16xbf16>, vector<16x32xbf16>, vector<8x32xf32> -> vector<8x32xf32>
    %28 = arith.addf %22, %27 : vector<8x32xf32>
    %c0_29 = arith.constant 0 : index
    %c0_30 = arith.constant 0 : index
    %29 = vector.load %arg4[%c0_29, %c0_30] : memref<1x32xf32, #tpu.memory_space<vmem>>, vector<1x32xf32>
    %30 = vector.broadcast %29 : vector<1x32xf32> to vector<8x32xf32>
    %31 = arith.addf %28, %30 : vector<8x32xf32>
    %cst_31 = arith.constant 5.000000e-01 : f32
    %32 = vector.broadcast %cst_31 : f32 to vector<8x32xf32>
    %33 = arith.mulf %32, %31 : vector<8x32xf32>
    %cst_32 = arith.constant 4.471500e-02 : f32
    %34 = vector.broadcast %cst_32 : f32 to vector<8x32xf32>
    %35 = arith.mulf %34, %31 : vector<8x32xf32>
    %36 = arith.mulf %35, %31 : vector<8x32xf32>
    %37 = arith.mulf %36, %31 : vector<8x32xf32>
    %38 = arith.addf %31, %37 : vector<8x32xf32>
    %cst_33 = arith.constant 0.797884583 : f32
    %39 = vector.broadcast %cst_33 : f32 to vector<8x32xf32>
    %40 = arith.mulf %39, %38 : vector<8x32xf32>
    %41 = math.tanh %40 : vector<8x32xf32>
    %cst_34 = arith.constant 1.000000e+00 : f32
    %42 = vector.broadcast %cst_34 : f32 to vector<8x32xf32>
    %43 = arith.addf %42, %41 : vector<8x32xf32>
    %44 = arith.mulf %33, %43 : vector<8x32xf32>
    %45 = arith.truncf %44 : vector<8x32xf32> to vector<8x32xbf16>
    %c0_35 = arith.constant 0 : index
    %c0_36 = arith.constant 0 : index
    %c0_37 = arith.constant 0 : index
    %46 = vector.load %arg5[%c0_35, %c0_36, %c0_37] : memref<1x8x32xbf16, #tpu.memory_space<vmem>>, vector<1x8x32xbf16>
    %47 = vector.shape_cast %46 : vector<1x8x32xbf16> to vector<8x32xbf16>
    %48 = vector.shape_cast %45 : vector<8x32xbf16> to vector<1x8x32xbf16>
    tpu.vector_store %arg5[%c0_35, %c0_36, %c0_37], %48 {strides = array<i32>} : memref<1x8x32xbf16, #tpu.memory_space<vmem>>, vector<1x8x32xbf16>,
    return
  }
  func.func @transform_0(%arg0: i32) -> (i32, i32, i32) {
    %c0_i32 = arith.constant 0 : i32
    %c0_i32_0 = arith.constant 0 : i32
    %c0_i32_1 = arith.constant 0 : i32
    return %arg0, %c0_i32, %c0_i32_0 : i32, i32, i32
  }
  func.func @transform_1(%arg0: i32) -> (i32, i32, i32) {
    %c0_i32 = arith.constant 0 : i32
    %c0_i32_0 = arith.constant 0 : i32
    %c0_i32_1 = arith.constant 0 : i32
    return %arg0, %c0_i32, %c0_i32_0 : i32, i32, i32
  }
  func.func @transform_2(%arg0: i32) -> (i32, i32, i32) {
    %c0_i32 = arith.constant 0 : i32
    %c0_i32_0 = arith.constant 0 : i32
    %c0_i32_1 = arith.constant 0 : i32
    %c0_i32_2 = arith.constant 0 : i32
    return %c0_i32, %c0_i32_0, %c0_i32_1 : i32, i32, i32
  }
  func.func @transform_3(%arg0: i32) -> (i32, i32) {
    %c0_i32 = arith.constant 0 : i32
    %c0_i32_0 = arith.constant 0 : i32
    %c0_i32_1 = arith.constant 0 : i32
    return %c0_i32, %c0_i32_0 : i32, i32
  }
  func.func @transform_4(%arg0: i32) -> (i32, i32, i32) {
    %c0_i32 = arith.constant 0 : i32
    %c0_i32_0 = arith.constant 0 : i32
    %c0_i32_1 = arith.constant 0 : i32
    return %arg0, %c0_i32, %c0_i32_0 : i32, i32, i32
  }
}

module attributes {stable_mosaic.version = 11 : i64} {
  func.func @_linear_kernel(%arg0: i32, %arg1: i32, %arg2: i32, %arg3: memref<8x256xbf16, #tpu.memory_space<vmem>>, %arg4: memref<256x128xbf16, #tpu.memory_space<vmem>>, %arg5: memref<1x128xf32, #tpu.memory_space<vmem>>, %arg6: memref<8x128xf32, #tpu.memory_space<vmem>>, %arg7: memref<8x128xf32, #tpu.memory_space<vmem>>) attributes {dimension_semantics = [#tpu.dimension_semantics<parallel>, #tpu.dimension_semantics<parallel>, #tpu.dimension_semantics<arbitrary>], iteration_bounds = array<i64: 1, 1, 1>, scalar_prefetch = 0 : i64, scratch_operands = 1 : i64, tpu.core_type = #tpu.core_type<tc>, window_params = [{transform_indices = @transform_0, window_bounds = array<i64: 8, 256>}, {transform_indices = @transform_1, window_bounds = array<i64: 256, 128>}, {transform_indices = @transform_2, window_bounds = array<i64: 1, 128>}, {transform_indices = @transform_3, window_bounds = array<i64: 8, 128>}]} {
    %c0_i32 = arith.constant 0 : i32
    %0 = arith.cmpi eq, %arg2, %c0_i32 : i32
    %1 = arith.extui %0 : i1 to i32
    %c0_i32_0 = arith.constant 0 : i32
    %2 = arith.cmpi ne, %1, %c0_i32_0 : i32
    scf.if %2 {
      %cst_10 = arith.constant 0.000000e+00 : f32
      %12 = vector.broadcast %cst_10 : f32 to vector<8x128xf32>
      %c0_11 = arith.constant 0 : index
      %c0_12 = arith.constant 0 : index
      %13 = vector.load %arg7[%c0_11, %c0_12] : memref<8x128xf32, #tpu.memory_space<vmem>>, vector<8x128xf32>
      tpu.vector_store %arg7[%c0_11, %c0_12], %12 {strides = array<i32>} : memref<8x128xf32, #tpu.memory_space<vmem>>, vector<8x128xf32>,
    } else {
    }
    %c0 = arith.constant 0 : index
    %c0_1 = arith.constant 0 : index
    %3 = vector.load %arg7[%c0, %c0_1] : memref<8x128xf32, #tpu.memory_space<vmem>>, vector<8x128xf32>
    %c0_2 = arith.constant 0 : index
    %c0_3 = arith.constant 0 : index
    %4 = vector.load %arg3[%c0_2, %c0_3] : memref<8x256xbf16, #tpu.memory_space<vmem>>, vector<8x256xbf16>
    %c0_4 = arith.constant 0 : index
    %c0_5 = arith.constant 0 : index
    %5 = vector.load %arg4[%c0_4, %c0_5] : memref<256x128xbf16, #tpu.memory_space<vmem>>, vector<256x128xbf16>
    %cst = arith.constant dense<0.000000e+00> : vector<8x128xf32>
    %6 = tpu.matmul %4, %5, %cst {dimension_numbers = #tpu.dot_dimension_numbers<[1], [0], [0], [1], [0, 0, 1, 1], [], []>} : vector<8x256xbf16>, vector<256x128xbf16>, vector<8x128xf32> -> vector<8x128xf32>
    %7 = arith.addf %3, %6 : vector<8x128xf32>
    %c0_6 = arith.constant 0 : index
    %c0_7 = arith.constant 0 : index
    %8 = vector.load %arg7[%c0_6, %c0_7] : memref<8x128xf32, #tpu.memory_space<vmem>>, vector<8x128xf32>
    tpu.vector_store %arg7[%c0_6, %c0_7], %7 {strides = array<i32>} : memref<8x128xf32, #tpu.memory_space<vmem>>, vector<8x128xf32>,
    %c0_i32_8 = arith.constant 0 : i32
    %9 = arith.cmpi eq, %arg2, %c0_i32_8 : i32
    %10 = arith.extui %9 : i1 to i32
    %c0_i32_9 = arith.constant 0 : i32
    %11 = arith.cmpi ne, %10, %c0_i32_9 : i32
    scf.if %11 {
      %c0_10 = arith.constant 0 : index
      %c0_11 = arith.constant 0 : index
      %12 = vector.load %arg7[%c0_10, %c0_11] : memref<8x128xf32, #tpu.memory_space<vmem>>, vector<8x128xf32>
      %c0_12 = arith.constant 0 : index
      %c0_13 = arith.constant 0 : index
      %13 = vector.load %arg5[%c0_12, %c0_13] : memref<1x128xf32, #tpu.memory_space<vmem>>, vector<1x128xf32>
      %14 = vector.broadcast %13 : vector<1x128xf32> to vector<8x128xf32>
      %15 = arith.addf %12, %14 : vector<8x128xf32>
      %c0_14 = arith.constant 0 : index
      %c0_15 = arith.constant 0 : index
      %16 = vector.load %arg6[%c0_14, %c0_15] : memref<8x128xf32, #tpu.memory_space<vmem>>, vector<8x128xf32>
      tpu.vector_store %arg6[%c0_14, %c0_15], %15 {strides = array<i32>} : memref<8x128xf32, #tpu.memory_space<vmem>>, vector<8x128xf32>,
    } else {
    }
    return
  }
  func.func @transform_0(%arg0: i32, %arg1: i32, %arg2: i32) -> (i32, i32) {
    %c0_i32 = arith.constant 0 : i32
    return %arg0, %arg2 : i32, i32
  }
  func.func @transform_1(%arg0: i32, %arg1: i32, %arg2: i32) -> (i32, i32) {
    %c0_i32 = arith.constant 0 : i32
    return %arg2, %arg1 : i32, i32
  }
  func.func @transform_2(%arg0: i32, %arg1: i32, %arg2: i32) -> (i32, i32) {
    %c0_i32 = arith.constant 0 : i32
    %c0_i32_0 = arith.constant 0 : i32
    return %c0_i32, %arg1 : i32, i32
  }
  func.func @transform_3(%arg0: i32, %arg1: i32, %arg2: i32) -> (i32, i32) {
    %c0_i32 = arith.constant 0 : i32
    return %arg0, %arg1 : i32, i32
  }
}

</mosaic_0001>

<llo_original>
// kernel: eeg_decomposer_forward.4
$region0: #{eeg_decomposer_forward.4}
  #allocation0 [shape = 'u32[]', space=smem, size = 0x4, offset = 0x4, fixed_abs, tag = 'smem constant byte address 0x4 - core index']
  #allocation1 [shape = 'u32[144,128]{1,0:T(1,128)}', space=vmem, size = 0x12000, scoped, tag = 'internal scratch']
  %s0 = inlined_call_operand.vmem [shape: bf16[2,10,16], index: 0, kind: input, shape index: {}]
  %s1 = inlined_call_operand.vmem [shape: bf16[2,10,16], index: 1, kind: input, shape index: {}]
  %s2 = inlined_call_operand.vmem [shape: bf16[5,16,32], index: 2, kind: input, shape index: {}]
  %s3 = inlined_call_operand.vmem [shape: f32[1,32], index: 3, kind: input, shape index: {}]
  %s4 = inlined_call_operand.vmem [shape: bf16[2,8,32], index: 4, kind: output, shape index: {}]
  %s5 = sld [smem:[#allocation0]]
  $region49: #{eeg_decomposer_forward.4} parent=0
    _
  %s7 = ssub.s32 1, %s5
  %s8 = scalar_select 0, %s7, %s5
  loop: start=0, step=1, limit=4
  $region2: #{eeg_decomposer_forward.4} parent=0 // loop_pre_header
    _
  $region3: #{eeg_decomposer_forward.4} parent=0 // loop_header
    %s10 = sphi 0, %s14
    %p11 = scmp.ge.s32.totalorder %s10, 4
    %s20 = sphi 0, %s22
    %s23 = sphi 0, %s20
    %s24 = sphi 0, %s23
    %s40 = sphi 0, %s24
    %s46 = sphi 0, %s48
    %s49 = sphi 0, %s46
    %s50 = sphi 0, %s49
    %s66 = sphi 0, %s50
    %s70 = sphi 0, %s70
    %s72 = sphi 0, %s70
    %s73 = sphi 0, %s72
    %s87 = sphi 0, %s73
    %s91 = sphi 0, %s91
    %s93 = sphi 0, %s91
    %s94 = sphi 0, %s93
    %s108 = sphi 0, %s94
    %s114 = sphi 0, %s116
    %s117 = sphi 0, %s114
    %s118 = sphi 0, %s117
    %s134 = sphi 0, %s118
  $region4: #{eeg_decomposer_forward.4} parent=0 // loop_header_branch
    %13 = sbr.rel (%p11) target = $region8
  $region5: #{eeg_decomposer_forward.4} parent=0 // loop_body
    %s15 = ssub.s32 %s10, 1
    %s16 = ssub.s32 %s10, 2
    %s17 = sadd.s32 %s10, 1
    %s18 = ssub.s32 %s10, %s17
    %p19 = scmp.eq.s32.totalorder %s18, 0
    %s21 = sadd.s32 %s20, 1
    %s22 = scalar_select %p19, %s20, %s21
    %p25 = pneg %p19
    %p26 = scmp.eq.s32.totalorder %s10, 1
    %p27 = por %p25, %p26
    %p28 = scmp.ne.s32.totalorder %s20, %s23
    %p29 = scmp.eq.s32.totalorder %s10, 0
    %p30 = por %p28, %p29
    %p31 = scmp.ne.s32.totalorder %s20, %s23
    %p32 = scmp.eq.s32.totalorder %s15, 1
    %p33 = por %p31, %p32
    %p34 = scmp.ne.s32.totalorder %s23, %s24
    %p35 = scmp.eq.s32.totalorder %s15, 0
    %p36 = por %p34, %p35
    %p37 = scmp.ne.s32.totalorder %s23, %s24
    %p38 = scmp.eq.s32.totalorder %s16, 1
    %p39 = por %p37, %p38
    %p41 = scmp.ne.s32.totalorder %s24, %s40
    %p42 = scmp.eq.s32.totalorder %s16, 0
    %p43 = por %p41, %p42
    %s44 = ssub.s32 %s10, %s17
    %p45 = scmp.eq.s32.totalorder %s44, 0
    %s47 = sadd.s32 %s46, 1
    %s48 = scalar_select %p45, %s46, %s47
    %p51 = pneg %p45
    %p52 = scmp.eq.s32.totalorder %s10, 1
    %p53 = por %p51, %p52
    %p54 = scmp.ne.s32.totalorder %s46, %s49
    %p55 = scmp.eq.s32.totalorder %s10, 0
    %p56 = por %p54, %p55
    %p57 = scmp.ne.s32.totalorder %s46, %s49
    %p58 = scmp.eq.s32.totalorder %s15, 1
    %p59 = por %p57, %p58
    %p60 = scmp.ne.s32.totalorder %s49, %s50
    %p61 = scmp.eq.s32.totalorder %s15, 0
    %p62 = por %p60, %p61
    %p63 = scmp.ne.s32.totalorder %s49, %s50
    %p64 = scmp.eq.s32.totalorder %s16, 1
    %p65 = por %p63, %p64
    %p67 = scmp.ne.s32.totalorder %s50, %s66
    %p68 = scmp.eq.s32.totalorder %s16, 0
    %p69 = por %p67, %p68
    %s71 = sadd.s32 %s70, 1
    %p74 = scmp.eq.s32.totalorder %s10, 1
    %p75 = scmp.ne.s32.totalorder %s70, %s72
    %p76 = scmp.eq.s32.totalorder %s10, 0
    %p77 = por %p75, %p76
    %p78 = scmp.ne.s32.totalorder %s70, %s72
    %p79 = scmp.eq.s32.totalorder %s15, 1
    %p80 = por %p78, %p79
    %p81 = scmp.ne.s32.totalorder %s72, %s73
    %p82 = scmp.eq.s32.totalorder %s15, 0
    %p83 = por %p81, %p82
    %p84 = scmp.ne.s32.totalorder %s72, %s73
    %p85 = scmp.eq.s32.totalorder %s16, 1
    %p86 = por %p84, %p85
    %p88 = scmp.ne.s32.totalorder %s73, %s87
    %p89 = scmp.eq.s32.totalorder %s16, 0
    %p90 = por %p88, %p89
    %s92 = sadd.s32 %s91, 1
    %p95 = scmp.eq.s32.totalorder %s10, 1
    %p96 = scmp.ne.s32.totalorder %s91, %s93
    %p97 = scmp.eq.s32.totalorder %s10, 0
    %p98 = por %p96, %p97
    %p99 = scmp.ne.s32.totalorder %s91, %s93
    %p100 = scmp.eq.s32.totalorder %s15, 1
    %p101 = por %p99, %p100
    %p102 = scmp.ne.s32.totalorder %s93, %s94
    %p103 = scmp.eq.s32.totalorder %s15, 0
    %p104 = por %p102, %p103
    %p105 = scmp.ne.s32.totalorder %s93, %s94
    %p106 = scmp.eq.s32.totalorder %s16, 1
    %p107 = por %p105, %p106
    %p109 = scmp.ne.s32.totalorder %s94, %s108
    %p110 = scmp.eq.s32.totalorder %s16, 0
    %p111 = por %p109, %p110
    %s112 = ssub.s32 %s10, %s17
    %p113 = scmp.eq.s32.totalorder %s112, 0
    %s115 = sadd.s32 %s114, 1
    %s116 = scalar_select %p113, %s114, %s115
    %p119 = pneg %p113
    %p120 = scmp.eq.s32.totalorder %s10, 1
    %p121 = por %p119, %p120
    %p122 = scmp.ne.s32.totalorder %s114, %s117
    %p123 = scmp.eq.s32.totalorder %s10, 0
    %p124 = por %p122, %p123
    %p125 = scmp.ne.s32.totalorder %s114, %s117
    %p126 = scmp.eq.s32.totalorder %s15, 1
    %p127 = por %p125, %p126
    %p128 = scmp.ne.s32.totalorder %s117, %s118
    %p129 = scmp.eq.s32.totalorder %s15, 0
    %p130 = por %p128, %p129
    %p131 = scmp.ne.s32.totalorder %s117, %s118
    %p132 = scmp.eq.s32.totalorder %s16, 1
    %p133 = por %p131, %p132
    %p135 = scmp.ne.s32.totalorder %s118, %s134
    %p136 = scmp.eq.s32.totalorder %s16, 0
    %p137 = por %p135, %p136
    %p138 = scmp.le.s32.totalorder 1, %s10
    %p139 = scmp.lt.s32.totalorder %s10, 3
    %p140 = pnand %p138, %p139
    %p141 = pneg %p140
    // Predicated region
    $region9: #{eeg_decomposer_forward.4} parent=5 // pred_check
      _
    $region10: #{eeg_decomposer_forward.4} parent=5 // pred_check_branch
      %143 = sbr.rel (%p140) target = $region12
    $region11: #{eeg_decomposer_forward.4} parent=5 // pred_region
      %s144 = ssub.s32 %s10, 1
      // Predicated region
      $region13: #{eeg_decomposer_forward.4} parent=11 // pred_check
        %p145 = pneg %p83
      $region14: #{eeg_decomposer_forward.4} parent=11 // pred_check_branch
        %147 = sbr.rel (%p145) target = $region16
      $region15: #{eeg_decomposer_forward.4} parent=11 // pred_region
        _
      $region16: #{eeg_decomposer_forward.4} parent=11 // pred_fallthru
        _
      // Predicated region
      $region17: #{eeg_decomposer_forward.4} parent=11 // pred_check
        %p148 = pneg %p104
      $region18: #{eeg_decomposer_forward.4} parent=11 // pred_check_branch
        %150 = sbr.rel (%p148) target = $region20
      $region19: #{eeg_decomposer_forward.4} parent=11 // pred_region
        _
      $region20: #{eeg_decomposer_forward.4} parent=11 // pred_fallthru
        _
    $region12: #{eeg_decomposer_forward.4} parent=5 // pred_fallthru
      _
    %p151 = scmp.lt.s32.totalorder %s10, 2
    // Predicated region
    $region21: #{eeg_decomposer_forward.4} parent=5 // pred_check
      %p152 = pneg %p151
    $region22: #{eeg_decomposer_forward.4} parent=5 // pred_check_branch
      %154 = sbr.rel (%p152) target = $region24
    $region23: #{eeg_decomposer_forward.4} parent=5 // pred_region
      // Predicated region
      $region25: #{eeg_decomposer_forward.4} parent=23 // pred_check
        %p155 = pneg %p30
      $region26: #{eeg_decomposer_forward.4} parent=23 // pred_check_branch
        %157 = sbr.rel (%p155) target = $region28
      $region27: #{eeg_decomposer_forward.4} parent=23 // pred_region
        %p158 = scmp.lt.s32.totalorder %s10, 1
        %s159 = scalar_select %p158, %s10, 1
        %s160 = smul.addr %s159, 2
        %s161 = smul.addr %s160, 4
        %s162 = scalar_lea.vmem %s0, %s161
      $region28: #{eeg_decomposer_forward.4} parent=23 // pred_fallthru
        _
      // Predicated region
      $region29: #{eeg_decomposer_forward.4} parent=23 // pred_check
        %p163 = pneg %p56
      $region30: #{eeg_decomposer_forward.4} parent=23 // pred_check_branch
        %165 = sbr.rel (%p163) target = $region32
      $region31: #{eeg_decomposer_forward.4} parent=23 // pred_region
        %p166 = scmp.lt.s32.totalorder %s10, 1
        %s167 = scalar_select %p166, %s10, 1
        %s168 = smul.addr %s167, 2
        %s169 = smul.addr %s168, 4
        %s170 = scalar_lea.vmem %s1, %s169
      $region32: #{eeg_decomposer_forward.4} parent=23 // pred_fallthru
        _
    $region24: #{eeg_decomposer_forward.4} parent=5 // pred_fallthru
      _
    %p171 = scmp.le.s32.totalorder 1, %s10
    %p172 = scmp.lt.s32.totalorder %s10, 3
    %p173 = pnand %p171, %p172
    %p174 = pneg %p173
    // Predicated region
    $region33: #{eeg_decomposer_forward.4} parent=5 // pred_check
      _
    $region34: #{eeg_decomposer_forward.4} parent=5 // pred_check_branch
      %176 = sbr.rel (%p173) target = $region36
    $region35: #{eeg_decomposer_forward.4} parent=5 // pred_region
      %s177 = ssub.s32 %s10, 1
      %p178 = scmp.lt.s32.totalorder %s15, 1
      %s179 = scalar_select %p178, %s15, 1
      %s180 = smul.addr %s179, 2
      %s181 = smul.addr %s180, 4
      %s182 = scalar_lea.vmem %s0, %s181
      %p183 = pneg %p36
      %p184 = pneg %p33
      %p185 = scmp.lt.s32.totalorder %s15, 1
      %s186 = scalar_select %p185, %s15, 1
      %s187 = smul.addr %s186, 2
      %s188 = smul.addr %s187, 4
      %s189 = scalar_lea.vmem %s1, %s188
      %p190 = pneg %p62
      %p191 = pneg %p59
      %p192 = pneg %p83
      %p193 = pneg %p80
      %p194 = pneg %p104
      %p195 = pneg %p101
      %p196 = pneg %p130
      %p197 = pneg %p127
      %p198 = scmp.lt.s32.totalorder %s15, 1
      %s199 = scalar_select %p198, %s15, 1
      %s200 = smul.addr %s199, 4
      %s201 = scalar_lea.vmem %s4, %s200
      %p202 = scmp.lt.s32.totalorder %s15, 1
      %s203 = scalar_select %p202, %s15, 1
      %s204 = smul.addr %s203, 2
      %s205 = smul.addr %s204, 4
      %s206 = scalar_lea.vmem %s0, %s205
      %p207 = scmp.lt.s32.totalorder %s15, 1
      %s208 = scalar_select %p207, %s15, 1
      %s209 = smul.addr %s208, 2
      %s210 = smul.addr %s209, 4
      %s211 = scalar_lea.vmem %s1, %s210
      %p212 = scmp.lt.s32.totalorder %s15, 1
      %s213 = scalar_select %p212, %s15, 1
      %s214 = smul.addr %s213, 4
      %s215 = scalar_lea.vmem %s4, %s214
      %v217 = vld [vmem:[%s206] sm:$0xf]
      %v218 = vld [vmem:[%s2] sm:$0xf]
      %v219 = vld [vmem:[%s2 + $0x4] sm:$0xf]
      %v220 = vld [vmem:[%s211] sm:$0xf]
      %s221 = scalar_lea.vmem %s2, 8
      %v222 = vld [vmem:[%s221] sm:$0xf]
      %v223 = vld [vmem:[%s221 + $0x4] sm:$0xf]
      %v226 = vunpack.c.l.b16 %v222
      %v227 = vunpack.c.l.b16 %v223
      %v228 = vpack.c.b16 %v227, %v226
      %vm230 = vcmask 130048
      %v232 = vsel %vm230, %v220, 0
      %234 = vmatprep.subr.bf16.mxu0 0
      %235 = vmatpush1.bf16.msra.mxu0 %v228
      %236 = vmatprep.subr.bf16.mxu0 0
      %237 = vmatpush1.bf16.msra.mxu0 0
      %238 = vmatprep.subr.bf16.mxu0 0
      %239 = vmatpush1.bf16.msra.mxu0 0
      %240 = vmatprep.subr.bf16.mxu0 0
      %241 = vmatpush1.bf16.msra.mxu0 0
      %242 = vmatprep.subr.bf16.mxu0 0
      %243 = vmatpush1.bf16.msra.mxu0 0
      %244 = vmatprep.subr.bf16.mxu0 0
      %245 = vmatpush1.bf16.msra.mxu0 0
      %246 = vmatprep.subr.bf16.mxu0 0
      %247 = vmatpush1.bf16.msra.mxu0 0
      %248 = vmatprep.subr.bf16.mxu0 0
      %249 = vmatpush1.bf16.msra.mxu0 0
      %250 = vmatprep.subr.bf16.mxu0 0
      %251 = vmatpush1.bf16.msra.mxu0 0
      %252 = vmatprep.subr.bf16.mxu0 0
      %253 = vmatpush1.bf16.msra.mxu0 0
      %254 = vmatprep.subr.bf16.mxu0 0
      %255 = vmatpush1.bf16.msra.mxu0 0
      %256 = vmatprep.subr.bf16.mxu0 0
      %257 = vmatpush1.bf16.msra.mxu0 0
      %258 = vmatprep.subr.bf16.mxu0 0
      %259 = vmatpush1.bf16.msra.mxu0 0
      %260 = vmatprep.subr.bf16.mxu0 0
      %261 = vmatpush1.bf16.msra.mxu0 0
      %262 = vmatprep.subr.bf16.mxu0 0
      %263 = vmatpush1.bf16.msra.mxu0 0
      %264 = vmatprep.subr.bf16.mxu0 0
      %265 = vmatpush1.bf16.msra.mxu0 0
      %266 = vmatprep.mubr.bf16.mxu0 0
      %267 = vmatmul.mubr.bf16.gmra.mrb[0].mxu0 %v232
      %v268 = vpop.f32.mrb[0].mxu0
      %v269 = vadd.f32 0.0, %v268
      %v270 = vpop.f32.mrb[0].mxu0
      %v271 = vpop.f32.mrb[0].mxu0
      %v272 = vpop.f32.mrb[0].mxu0
      %273 = vdwg.mxu0
      %v276 = vunpack.c.l.b16 %v218
      %v277 = vunpack.c.l.b16 %v219
      %v278 = vpack.c.b16 %v277, %v276
      %v281 = vsel %vm230, %v217, 0
      %283 = vmatprep.subr.bf16.mxu0 0
      %284 = vmatpush1.bf16.msra.mxu0 %v278
      %285 = vmatprep.subr.bf16.mxu0 0
      %286 = vmatpush1.bf16.msra.mxu0 0
      %287 = vmatprep.subr.bf16.mxu0 0
      %288 = vmatpush1.bf16.msra.mxu0 0
      %289 = vmatprep.subr.bf16.mxu0 0
      %290 = vmatpush1.bf16.msra.mxu0 0
      %291 = vmatprep.subr.bf16.mxu0 0
      %292 = vmatpush1.bf16.msra.mxu0 0
      %293 = vmatprep.subr.bf16.mxu0 0
      %294 = vmatpush1.bf16.msra.mxu0 0
      %295 = vmatprep.subr.bf16.mxu0 0
      %296 = vmatpush1.bf16.msra.mxu0 0
      %297 = vmatprep.subr.bf16.mxu0 0
      %298 = vmatpush1.bf16.msra.mxu0 0
      %299 = vmatprep.subr.bf16.mxu0 0
      %300 = vmatpush1.bf16.msra.mxu0 0
      %301 = vmatprep.subr.bf16.mxu0 0
      %302 = vmatpush1.bf16.msra.mxu0 0
      %303 = vmatprep.subr.bf16.mxu0 0
      %304 = vmatpush1.bf16.msra.mxu0 0
      %305 = vmatprep.subr.bf16.mxu0 0
      %306 = vmatpush1.bf16.msra.mxu0 0
      %307 = vmatprep.subr.bf16.mxu0 0
      %308 = vmatpush1.bf16.msra.mxu0 0
      %309 = vmatprep.subr.bf16.mxu0 0
      %310 = vmatpush1.bf16.msra.mxu0 0
      %311 = vmatprep.subr.bf16.mxu0 0
      %312 = vmatpush1.bf16.msra.mxu0 0
      %313 = vmatprep.subr.bf16.mxu0 0
      %314 = vmatpush1.bf16.msra.mxu0 0
      %315 = vmatprep.mubr.bf16.mxu0 0
      %316 = vmatmul.mubr.bf16.gmra.mrb[0].mxu0 %v281
      %v317 = vpop.f32.mrb[0].mxu0
      %v318 = vadd.f32 %v269, %v317
      %v319 = vpop.f32.mrb[0].mxu0
      %v320 = vpop.f32.mrb[0].mxu0
      %v321 = vpop.f32.mrb[0].mxu0
      %322 = vdwg.mxu0
      %v323 = vld [vmem:[%s206] sm:$0xf]
      %v324 = vld [vmem:[%s206 + $0x4] sm:$0x1]
      %s325 = scalar_lea.vmem %s2, 16
      %v326 = vld [vmem:[%s325] sm:$0xf]
      %v327 = vld [vmem:[%s325 + $0x4] sm:$0xf]
      %v330 = vunpack.c.l.b16 %v323
      %v331 = vunpack.c.l.b16 %v324
      %v332 = vpack.c.b16 %v331, %v330
      %v334 = vshrl.u32 %v332, 16
      %v336 = vshll.u32 %v332, 16
      %v338 = vrot.slane %v336, 1
      %v339 = vor.u32 %v334, %v338
      %v342 = vunpack.c.l.b16 %v326
      %v343 = vunpack.c.l.b16 %v327
      %v344 = vpack.c.b16 %v343, %v342
      %v347 = vsel %vm230, %v339, 0
      %349 = vmatprep.subr.bf16.mxu0 0
      %350 = vmatpush1.bf16.msra.mxu0 %v344
      %351 = vmatprep.subr.bf16.mxu0 0
      %352 = vmatpush1.bf16.msra.mxu0 0
      %353 = vmatprep.subr.bf16.mxu0 0
      %354 = vmatpush1.bf16.msra.mxu0 0
      %355 = vmatprep.subr.bf16.mxu0 0
      %356 = vmatpush1.bf16.msra.mxu0 0
      %357 = vmatprep.subr.bf16.mxu0 0
      %358 = vmatpush1.bf16.msra.mxu0 0
      %359 = vmatprep.subr.bf16.mxu0 0
      %360 = vmatpush1.bf16.msra.mxu0 0
      %361 = vmatprep.subr.bf16.mxu0 0
      %362 = vmatpush1.bf16.msra.mxu0 0
      %363 = vmatprep.subr.bf16.mxu0 0
      %364 = vmatpush1.bf16.msra.mxu0 0
      %365 = vmatprep.subr.bf16.mxu0 0
      %366 = vmatpush1.bf16.msra.mxu0 0
      %367 = vmatprep.subr.bf16.mxu0 0
      %368 = vmatpush1.bf16.msra.mxu0 0
      %369 = vmatprep.subr.bf16.mxu0 0
      %370 = vmatpush1.bf16.msra.mxu0 0
      %371 = vmatprep.subr.bf16.mxu0 0
      %372 = vmatpush1.bf16.msra.mxu0 0
      %373 = vmatprep.subr.bf16.mxu0 0
      %374 = vmatpush1.bf16.msra.mxu0 0
      %375 = vmatprep.subr.bf16.mxu0 0
      %376 = vmatpush1.bf16.msra.mxu0 0
      %377 = vmatprep.subr.bf16.mxu0 0
      %378 = vmatpush1.bf16.msra.mxu0 0
      %379 = vmatprep.subr.bf16.mxu0 0
      %380 = vmatpush1.bf16.msra.mxu0 0
      %381 = vmatprep.mubr.bf16.mxu0 0
      %382 = vmatmul.mubr.bf16.gmra.mrb[0].mxu0 %v347
      %v383 = vpop.f32.mrb[0].mxu0
      %v384 = vadd.f32 0.0, %v383
      %v385 = vpop.f32.mrb[0].mxu0
      %v386 = vpop.f32.mrb[0].mxu0
      %v387 = vpop.f32.mrb[0].mxu0
      %388 = vdwg.mxu0
      %v389 = vadd.f32 %v318, %v384
      %v390 = vld [vmem:[%s211] sm:$0xf]
      %v391 = vld [vmem:[%s211 + $0x4] sm:$0x1]
      %s392 = scalar_lea.vmem %s2, 24
      %v393 = vld [vmem:[%s392] sm:$0xf]
      %v394 = vld [vmem:[%s392 + $0x4] sm:$0xf]
      %v397 = vunpack.c.l.b16 %v390
      %v398 = vunpack.c.l.b16 %v391
      %v399 = vpack.c.b16 %v398, %v397
      %v401 = vshrl.u32 %v399, 16
      %v403 = vshll.u32 %v399, 16
      %v405 = vrot.slane %v403, 1
      %v406 = vor.u32 %v401, %v405
      %v409 = vunpack.c.l.b16 %v393
      %v410 = vunpack.c.l.b16 %v394
      %v411 = vpack.c.b16 %v410, %v409
      %v414 = vsel %vm230, %v406, 0
      %416 = vmatprep.subr.bf16.mxu0 0
      %417 = vmatpush1.bf16.msra.mxu0 %v411
      %418 = vmatprep.subr.bf16.mxu0 0
      %419 = vmatpush1.bf16.msra.mxu0 0
      %420 = vmatprep.subr.bf16.mxu0 0
      %421 = vmatpush1.bf16.msra.mxu0 0
      %422 = vmatprep.subr.bf16.mxu0 0
      %423 = vmatpush1.bf16.msra.mxu0 0
      %424 = vmatprep.subr.bf16.mxu0 0
      %425 = vmatpush1.bf16.msra.mxu0 0
      %426 = vmatprep.subr.bf16.mxu0 0
      %427 = vmatpush1.bf16.msra.mxu0 0
      %428 = vmatprep.subr.bf16.mxu0 0
      %429 = vmatpush1.bf16.msra.mxu0 0
      %430 = vmatprep.subr.bf16.mxu0 0
      %431 = vmatpush1.bf16.msra.mxu0 0
      %432 = vmatprep.subr.bf16.mxu0 0
      %433 = vmatpush1.bf16.msra.mxu0 0
      %434 = vmatprep.subr.bf16.mxu0 0
      %435 = vmatpush1.bf16.msra.mxu0 0
      %436 = vmatprep.subr.bf16.mxu0 0
      %437 = vmatpush1.bf16.msra.mxu0 0
      %438 = vmatprep.subr.bf16.mxu0 0
      %439 = vmatpush1.bf16.msra.mxu0 0
      %440 = vmatprep.subr.bf16.mxu0 0
      %441 = vmatpush1.bf16.msra.mxu0 0
      %442 = vmatprep.subr.bf16.mxu0 0
      %443 = vmatpush1.bf16.msra.mxu0 0
      %444 = vmatprep.subr.bf16.mxu0 0
      %445 = vmatpush1.bf16.msra.mxu0 0
      %446 = vmatprep.subr.bf16.mxu0 0
      %447 = vmatpush1.bf16.msra.mxu0 0
      %448 = vmatprep.mubr.bf16.mxu0 0
      %449 = vmatmul.mubr.bf16.gmra.mrb[0].mxu0 %v414
      %v450 = vpop.f32.mrb[0].mxu0
      %v451 = vadd.f32 0.0, %v450
      %v452 = vpop.f32.mrb[0].mxu0
      %v453 = vpop.f32.mrb[0].mxu0
      %v454 = vpop.f32.mrb[0].mxu0
      %455 = vdwg.mxu0
      %v456 = vadd.f32 %v389, %v451
      %v457 = vld [vmem:[%s206] sm:$0xe]
      %s458 = scalar_lea.vmem %s2, 32
      %v459 = vld [vmem:[%s458] sm:$0xf]
      %v460 = vld [vmem:[%s458 + $0x4] sm:$0xf]
      %v462 = vunpack.c.l.b16 %v457
      %v463 = vpack.c.b16 %v331, %v462
      %v464 = vrot.slane %v463, 1
      %v467 = vunpack.c.l.b16 %v459
      %v468 = vunpack.c.l.b16 %v460
      %v469 = vpack.c.b16 %v468, %v467
      %v472 = vsel %vm230, %v464, 0
      %474 = vmatprep.subr.bf16.mxu0 0
      %475 = vmatpush1.bf16.msra.mxu0 %v469
      %476 = vmatprep.subr.bf16.mxu0 0
      %477 = vmatpush1.bf16.msra.mxu0 0
      %478 = vmatprep.subr.bf16.mxu0 0
      %479 = vmatpush1.bf16.msra.mxu0 0
      %480 = vmatprep.subr.bf16.mxu0 0
      %481 = vmatpush1.bf16.msra.mxu0 0
      %482 = vmatprep.subr.bf16.mxu0 0
      %483 = vmatpush1.bf16.msra.mxu0 0
      %484 = vmatprep.subr.bf16.mxu0 0
      %485 = vmatpush1.bf16.msra.mxu0 0
      %486 = vmatprep.subr.bf16.mxu0 0
      %487 = vmatpush1.bf16.msra.mxu0 0
      %488 = vmatprep.subr.bf16.mxu0 0
      %489 = vmatpush1.bf16.msra.mxu0 0
      %490 = vmatprep.subr.bf16.mxu0 0
      %491 = vmatpush1.bf16.msra.mxu0 0
      %492 = vmatprep.subr.bf16.mxu0 0
      %493 = vmatpush1.bf16.msra.mxu0 0
      %494 = vmatprep.subr.bf16.mxu0 0
      %495 = vmatpush1.bf16.msra.mxu0 0
      %496 = vmatprep.subr.bf16.mxu0 0
      %497 = vmatpush1.bf16.msra.mxu0 0
      %498 = vmatprep.subr.bf16.mxu0 0
      %499 = vmatpush1.bf16.msra.mxu0 0
      %500 = vmatprep.subr.bf16.mxu0 0
      %501 = vmatpush1.bf16.msra.mxu0 0
      %502 = vmatprep.subr.bf16.mxu0 0
      %503 = vmatpush1.bf16.msra.mxu0 0
      %504 = vmatprep.subr.bf16.mxu0 0
      %505 = vmatpush1.bf16.msra.mxu0 0
      %506 = vmatprep.mubr.bf16.mxu0 0
      %507 = vmatmul.mubr.bf16.gmra.mrb[0].mxu0 %v472
      %v508 = vpop.f32.mrb[0].mxu0
      %v509 = vadd.f32 0.0, %v508
      %v510 = vpop.f32.mrb[0].mxu0
      %v511 = vpop.f32.mrb[0].mxu0
      %v512 = vpop.f32.mrb[0].mxu0
      %513 = vdwg.mxu0
      %v514 = vadd.f32 %v456, %v509
      %v515 = vld [vmem:[%s3] sm:$0x1]
      %v517 = vlaneseq
      %v518 = vshrl.u32 %v517, 7
      %v519 = vsub.s32 0, %v518
      %v520 = vrot.slane %v515, %v519
      %v522 = vadd.f32 %v514, %v520
      %v523 = vmul.f32 %v522, 0.5
      %v524 = vmul.f32 %v522, 0.044715
      %v525 = vmul.f32 %v524, %v522
      %v526 = vmul.f32 %v525, %v522
      %v527 = vadd.f32 %v522, %v526
      %v528 = vmul.f32 %v527, 0.7978846
      %v529 = vtanh.pop %v528
      %v530 = vadd.f32 %v529, 1.0
      %v531 = vmul.f32 %v523, %v530
      %v532 = vpack.c.bf16 %v531, %v531
      %vm533 = vcmask 257024
      %534 = vst.msk [vmem:[%s215] sm:$0xf] %vm533, %v532
      %p535 = scmp.lt.s32.totalorder %s15, 1
      %s536 = scalar_select %p535, %s15, 1
      %s537 = smul.addr %s536, 4
      %s538 = scalar_lea.vmem %s4, %s537
      // Predicated region
      $region37: #{eeg_decomposer_forward.4} parent=35 // pred_check
        %p539 = pneg %p127
      $region38: #{eeg_decomposer_forward.4} parent=35 // pred_check_branch
        %541 = sbr.rel (%p539) target = $region40
      $region39: #{eeg_decomposer_forward.4} parent=35 // pred_region
        _
      $region40: #{eeg_decomposer_forward.4} parent=35 // pred_fallthru
        _
    $region36: #{eeg_decomposer_forward.4} parent=5 // pred_fallthru
      _
    %p542 = scmp.le.s32.totalorder 2, %s10
    // Predicated region
    $region41: #{eeg_decomposer_forward.4} parent=5 // pred_check
      %p543 = pneg %p542
    $region42: #{eeg_decomposer_forward.4} parent=5 // pred_check_branch
      %545 = sbr.rel (%p543) target = $region44
    $region43: #{eeg_decomposer_forward.4} parent=5 // pred_region
      %s546 = ssub.s32 %s10, 2
      // Predicated region
      $region45: #{eeg_decomposer_forward.4} parent=43 // pred_check
        %p547 = pneg %p133
      $region46: #{eeg_decomposer_forward.4} parent=43 // pred_check_branch
        %549 = sbr.rel (%p547) target = $region48
      $region47: #{eeg_decomposer_forward.4} parent=43 // pred_region
        %p550 = scmp.lt.s32.totalorder %s16, 1
        %s551 = scalar_select %p550, %s16, 1
        %s552 = smul.addr %s551, 4
        %s553 = scalar_lea.vmem %s4, %s552
      $region48: #{eeg_decomposer_forward.4} parent=43 // pred_fallthru
        _
    $region44: #{eeg_decomposer_forward.4} parent=5 // pred_fallthru
      _
  $region6: #{eeg_decomposer_forward.4} parent=0 // loop_footer
    %s14 = sadd.s32 1, %s10
  $region7: #{eeg_decomposer_forward.4} parent=0 // loop_footer_branch
    %9 = sbr.rel target = $region3
  $region8: #{eeg_decomposer_forward.4} parent=0 // loop_exit
    _

// kernel: eeg_decomposer_forward.5
$region0: #{eeg_decomposer_forward.5}
  #allocation0 [shape = 'u32[]', space=smem, size = 0x4, offset = 0x4, fixed_abs, tag = 'smem constant byte address 0x4 - core index']
  #allocation1 [shape = 'u32[144,128]{1,0:T(1,128)}', space=vmem, size = 0x12000, scoped, tag = 'internal scratch']
  #allocation2 [shape = 'f32[8,128]{1,0:T(8,128)}', space=vmem, size = 0x1000, scoped, tag = 'scratch operand']
  %s0 = inlined_call_operand.vmem [shape: bf16[8,256], index: 0, kind: input, shape index: {}]
  %s1 = inlined_call_operand.vmem [shape: bf16[256,128], index: 1, kind: input, shape index: {}]
  %s2 = inlined_call_operand.vmem [shape: f32[1,128], index: 2, kind: input, shape index: {}]
  %s3 = inlined_call_operand.vmem [shape: f32[8,128], index: 3, kind: output, shape index: {}]
  %s4 = sld [smem:[#allocation0]]
  $region30: #{eeg_decomposer_forward.5} parent=0
    _
  %s6 = ssub.s32 1, %s4
  %s7 = scalar_select 0, %s6, %s4
  // Predicated region
  $region2: #{eeg_decomposer_forward.5} parent=0 // pred_check
    _
  $region3: #{eeg_decomposer_forward.5} parent=0 // pred_check_branch
    %9 = sbr.rel (0) target = $region5
  $region4: #{eeg_decomposer_forward.5} parent=0 // pred_region
    _
  $region5: #{eeg_decomposer_forward.5} parent=0 // pred_fallthru
    _
  // Predicated region
  $region6: #{eeg_decomposer_forward.5} parent=0 // pred_check
    _
  $region7: #{eeg_decomposer_forward.5} parent=0 // pred_check_branch
    %11 = sbr.rel (0) target = $region9
  $region8: #{eeg_decomposer_forward.5} parent=0 // pred_region
    _
  $region9: #{eeg_decomposer_forward.5} parent=0 // pred_fallthru
    _
  // Predicated region
  $region10: #{eeg_decomposer_forward.5} parent=0 // pred_check
    _
  $region11: #{eeg_decomposer_forward.5} parent=0 // pred_check_branch
    %13 = sbr.rel (0) target = $region13
  $region12: #{eeg_decomposer_forward.5} parent=0 // pred_region
    _
  $region13: #{eeg_decomposer_forward.5} parent=0 // pred_fallthru
    _
  %p15 = scmp.eq.s32.totalorder 0, 0
  // Predicated region
  $region14: #{eeg_decomposer_forward.5} parent=0 // pred_check
    %p16 = pneg %p15
  $region15: #{eeg_decomposer_forward.5} parent=0 // pred_check_branch
    %18 = sbr.rel (%p16) target = $region17
  $region16: #{eeg_decomposer_forward.5} parent=0 // pred_region
    %19 = vst [vmem:[#allocation2] sm:$0xff] 0.0
  $region17: #{eeg_decomposer_forward.5} parent=0 // pred_fallthru
    _
  %v20 = vld [vmem:[#allocation2] sm:$0xff]
  %v21 = vld [vmem:[%s0] sm:$0xff]
  %v22 = vld [vmem:[%s1] sm:$0xf]
  %v23 = vld [vmem:[%s1 + $0x4] sm:$0xf]
  %v24 = vld [vmem:[%s1 + $0x8] sm:$0xf]
  %v25 = vld [vmem:[%s1 + $0xc] sm:$0xf]
  %v26 = vld [vmem:[%s1 + $0x10] sm:$0xf]
  %v27 = vld [vmem:[%s1 + $0x14] sm:$0xf]
  %v28 = vld [vmem:[%s1 + $0x18] sm:$0xf]
  %v29 = vld [vmem:[%s1 + $0x1c] sm:$0xf]
  %v30 = vld [vmem:[%s1 + $0x20] sm:$0xf]
  %v31 = vld [vmem:[%s1 + $0x24] sm:$0xf]
  %v32 = vld [vmem:[%s1 + $0x28] sm:$0xf]
  %v33 = vld [vmem:[%s1 + $0x2c] sm:$0xf]
  %v34 = vld [vmem:[%s1 + $0x30] sm:$0xf]
  %v35 = vld [vmem:[%s1 + $0x34] sm:$0xf]
  %v36 = vld [vmem:[%s1 + $0x38] sm:$0xf]
  %v37 = vld [vmem:[%s1 + $0x3c] sm:$0xf]
  %v38 = vld [vmem:[%s1 + $0x40] sm:$0xf]
  %v39 = vld [vmem:[%s1 + $0x44] sm:$0xf]
  %v40 = vld [vmem:[%s1 + $0x48] sm:$0xf]
  %v41 = vld [vmem:[%s1 + $0x4c] sm:$0xf]
  %v42 = vld [vmem:[%s1 + $0x50] sm:$0xf]
  %v43 = vld [vmem:[%s1 + $0x54] sm:$0xf]
  %v44 = vld [vmem:[%s1 + $0x58] sm:$0xf]
  %v45 = vld [vmem:[%s1 + $0x5c] sm:$0xf]
  %v46 = vld [vmem:[%s1 + $0x60] sm:$0xf]
  %v47 = vld [vmem:[%s1 + $0x64] sm:$0xf]
  %v48 = vld [vmem:[%s1 + $0x68] sm:$0xf]
  %v49 = vld [vmem:[%s1 + $0x6c] sm:$0xf]
  %v50 = vld [vmem:[%s1 + $0x70] sm:$0xf]
  %v51 = vld [vmem:[%s1 + $0x74] sm:$0xf]
  %v52 = vld [vmem:[%s1 + $0x78] sm:$0xf]
  %v53 = vld [vmem:[%s1 + $0x7c] sm:$0xf]
  %v55 = vunpack.c.l.b16 %v21
  %v56 = vunpack.c.h.b16 %v21
  %v57 = vpack.c.b16 %v55, %v55
  %v58 = vpack.c.b16 %v56, %v56
  %v93 = vunpack.c.l.b16 %v22
  %v94 = vunpack.c.l.b16 %v23
  %v95 = vunpack.c.l.b16 %v24
  %v96 = vunpack.c.l.b16 %v25
  %v97 = vunpack.c.l.b16 %v26
  %v98 = vunpack.c.l.b16 %v27
  %v99 = vunpack.c.l.b16 %v28
  %v100 = vunpack.c.l.b16 %v29
  %v101 = vunpack.c.l.b16 %v30
  %v102 = vunpack.c.l.b16 %v31
  %v103 = vunpack.c.l.b16 %v32
  %v104 = vunpack.c.l.b16 %v33
  %v105 = vunpack.c.l.b16 %v34
  %v106 = vunpack.c.l.b16 %v35
  %v107 = vunpack.c.l.b16 %v36
  %v108 = vunpack.c.l.b16 %v37
  %v109 = vunpack.c.l.b16 %v38
  %v110 = vunpack.c.l.b16 %v39
  %v111 = vunpack.c.l.b16 %v40
  %v112 = vunpack.c.l.b16 %v41
  %v113 = vunpack.c.l.b16 %v42
  %v114 = vunpack.c.l.b16 %v43
  %v115 = vunpack.c.l.b16 %v44
  %v116 = vunpack.c.l.b16 %v45
  %v117 = vunpack.c.l.b16 %v46
  %v118 = vunpack.c.l.b16 %v47
  %v119 = vunpack.c.l.b16 %v48
  %v120 = vunpack.c.l.b16 %v49
  %v121 = vunpack.c.l.b16 %v50
  %v122 = vunpack.c.l.b16 %v51
  %v123 = vunpack.c.l.b16 %v52
  %v124 = vunpack.c.l.b16 %v53
  %v125 = vpack.c.b16 %v94, %v93
  %v126 = vpack.c.b16 %v96, %v95
  %v127 = vpack.c.b16 %v98, %v97
  %v128 = vpack.c.b16 %v100, %v99
  %v129 = vpack.c.b16 %v102, %v101
  %v130 = vpack.c.b16 %v104, %v103
  %v131 = vpack.c.b16 %v106, %v105
  %v132 = vpack.c.b16 %v108, %v107
  %v133 = vpack.c.b16 %v110, %v109
  %v134 = vpack.c.b16 %v112, %v111
  %v135 = vpack.c.b16 %v114, %v113
  %v136 = vpack.c.b16 %v116, %v115
  %v137 = vpack.c.b16 %v118, %v117
  %v138 = vpack.c.b16 %v120, %v119
  %v139 = vpack.c.b16 %v122, %v121
  %v140 = vpack.c.b16 %v124, %v123
  %157 = vmatprep.subr.bf16.mxu0 0
  %158 = vmatpush1.bf16.msra.mxu0 %v125
  %159 = vmatprep.subr.bf16.mxu0 0
  %160 = vmatpush1.bf16.msra.mxu0 %v126
  %161 = vmatprep.subr.bf16.mxu0 0
  %162 = vmatpush1.bf16.msra.mxu0 %v127
  %163 = vmatprep.subr.bf16.mxu0 0
  %164 = vmatpush1.bf16.msra.mxu0 %v128
  %165 = vmatprep.subr.bf16.mxu0 0
  %166 = vmatpush1.bf16.msra.mxu0 %v129
  %167 = vmatprep.subr.bf16.mxu0 0
  %168 = vmatpush1.bf16.msra.mxu0 %v130
  %169 = vmatprep.subr.bf16.mxu0 0
  %170 = vmatpush1.bf16.msra.mxu0 %v131
  %171 = vmatprep.subr.bf16.mxu0 0
  %172 = vmatpush1.bf16.msra.mxu0 %v132
  %173 = vmatprep.subr.bf16.mxu0 0
  %174 = vmatpush1.bf16.msra.mxu0 %v133
  %175 = vmatprep.subr.bf16.mxu0 0
  %176 = vmatpush1.bf16.msra.mxu0 %v134
  %177 = vmatprep.subr.bf16.mxu0 0
  %178 = vmatpush1.bf16.msra.mxu0 %v135
  %179 = vmatprep.subr.bf16.mxu0 0
  %180 = vmatpush1.bf16.msra.mxu0 %v136
  %181 = vmatprep.subr.bf16.mxu0 0
  %182 = vmatpush1.bf16.msra.mxu0 %v137
  %183 = vmatprep.subr.bf16.mxu0 0
  %184 = vmatpush1.bf16.msra.mxu0 %v138
  %185 = vmatprep.subr.bf16.mxu0 0
  %186 = vmatpush1.bf16.msra.mxu0 %v139
  %187 = vmatprep.subr.bf16.mxu0 0
  %188 = vmatpush1.bf16.msra.mxu0 %v140
  %189 = vmatprep.mubr.bf16.mxu0 %v58
  %190 = vmatmul.mubr.bf16.gmra.mrb[0].mxu0 %v57
  %v191 = vpop.f32.mrb[0].mxu0
  %v192 = vadd.f32 0.0, %v191
  %v193 = vpop.f32.mrb[0].mxu0
  %v194 = vpop.f32.mrb[0].mxu0
  %v195 = vpop.f32.mrb[0].mxu0
  %196 = vdwg.mxu0
  %v197 = vadd.f32 %v20, %v192
  %198 = vst [vmem:[#allocation2] sm:$0xff] %v197
  // Predicated region
  $region18: #{eeg_decomposer_forward.5} parent=0 // pred_check
    %p199 = pneg %p15
  $region19: #{eeg_decomposer_forward.5} parent=0 // pred_check_branch
    %201 = sbr.rel (%p199) target = $region21
  $region20: #{eeg_decomposer_forward.5} parent=0 // pred_region
    %v202 = vld [vmem:[#allocation2] sm:$0xff]
    %v203 = vld [vmem:[%s2] sm:$0x1]
    %v205 = vlaneseq
    %v206 = vshrl.u32 %v205, 7
    %v207 = vsub.s32 0, %v206
    %v208 = vrot.slane %v203, %v207
    %v210 = vadd.f32 %v202, %v208
    %211 = vst [vmem:[%s3] sm:$0xff] %v210
  $region21: #{eeg_decomposer_forward.5} parent=0 // pred_fallthru
    _
  // Predicated region
  $region22: #{eeg_decomposer_forward.5} parent=0 // pred_check
    _
  $region23: #{eeg_decomposer_forward.5} parent=0 // pred_check_branch
    %213 = sbr.rel (0) target = $region25
  $region24: #{eeg_decomposer_forward.5} parent=0 // pred_region
    _
  $region25: #{eeg_decomposer_forward.5} parent=0 // pred_fallthru
    _
  // Predicated region
  $region26: #{eeg_decomposer_forward.5} parent=0 // pred_check
    _
  $region27: #{eeg_decomposer_forward.5} parent=0 // pred_check_branch
    %215 = sbr.rel (0) target = $region29
  $region28: #{eeg_decomposer_forward.5} parent=0 // pred_region
    _
  $region29: #{eeg_decomposer_forward.5} parent=0 // pred_fallthru
    _

// kernel: eeg_decomposer_forward.3
$region0: #{eeg_decomposer_forward.3}
  #allocation0 [shape = 'u32[]', space=smem, size = 0x4, offset = 0x4, fixed_abs, tag = 'smem constant byte address 0x4 - core index']
  #allocation1 [shape = 'u32[144,128]{1,0:T(1,128)}', space=vmem, size = 0x12000, scoped, tag = 'internal scratch']
  %s0 = inlined_call_operand.vmem [shape: bf16[2,18,8], index: 0, kind: input, shape index: {}]
  %s1 = inlined_call_operand.vmem [shape: bf16[2,18,8], index: 1, kind: input, shape index: {}]
  %s2 = inlined_call_operand.vmem [shape: bf16[5,8,16], index: 2, kind: input, shape index: {}]
  %s3 = inlined_call_operand.vmem [shape: f32[1,16], index: 3, kind: input, shape index: {}]
  %s4 = inlined_call_operand.vmem [shape: bf16[2,16,16], index: 4, kind: output, shape index: {}]
  %s5 = sld [smem:[#allocation0]]
  $region49: #{eeg_decomposer_forward.3} parent=0
    _
  %s7 = ssub.s32 1, %s5
  %s8 = scalar_select 0, %s7, %s5
  loop: start=0, step=1, limit=4
  $region2: #{eeg_decomposer_forward.3} parent=0 // loop_pre_header
    _
  $region3: #{eeg_decomposer_forward.3} parent=0 // loop_header
    %s10 = sphi 0, %s14
    %p11 = scmp.ge.s32.totalorder %s10, 4
    %s20 = sphi 0, %s22
    %s23 = sphi 0, %s20
    %s24 = sphi 0, %s23
    %s40 = sphi 0, %s24
    %s46 = sphi 0, %s48
    %s49 = sphi 0, %s46
    %s50 = sphi 0, %s49
    %s66 = sphi 0, %s50
    %s70 = sphi 0, %s70
    %s72 = sphi 0, %s70
    %s73 = sphi 0, %s72
    %s87 = sphi 0, %s73
    %s91 = sphi 0, %s91
    %s93 = sphi 0, %s91
    %s94 = sphi 0, %s93
    %s108 = sphi 0, %s94
    %s114 = sphi 0, %s116
    %s117 = sphi 0, %s114
    %s118 = sphi 0, %s117
    %s134 = sphi 0, %s118
  $region4: #{eeg_decomposer_forward.3} parent=0 // loop_header_branch
    %13 = sbr.rel (%p11) target = $region8
  $region5: #{eeg_decomposer_forward.3} parent=0 // loop_body
    %s15 = ssub.s32 %s10, 1
    %s16 = ssub.s32 %s10, 2
    %s17 = sadd.s32 %s10, 1
    %s18 = ssub.s32 %s10, %s17
    %p19 = scmp.eq.s32.totalorder %s18, 0
    %s21 = sadd.s32 %s20, 1
    %s22 = scalar_select %p19, %s20, %s21
    %p25 = pneg %p19
    %p26 = scmp.eq.s32.totalorder %s10, 1
    %p27 = por %p25, %p26
    %p28 = scmp.ne.s32.totalorder %s20, %s23
    %p29 = scmp.eq.s32.totalorder %s10, 0
    %p30 = por %p28, %p29
    %p31 = scmp.ne.s32.totalorder %s20, %s23
    %p32 = scmp.eq.s32.totalorder %s15, 1
    %p33 = por %p31, %p32
    %p34 = scmp.ne.s32.totalorder %s23, %s24
    %p35 = scmp.eq.s32.totalorder %s15, 0
    %p36 = por %p34, %p35
    %p37 = scmp.ne.s32.totalorder %s23, %s24
    %p38 = scmp.eq.s32.totalorder %s16, 1
    %p39 = por %p37, %p38
    %p41 = scmp.ne.s32.totalorder %s24, %s40
    %p42 = scmp.eq.s32.totalorder %s16, 0
    %p43 = por %p41, %p42
    %s44 = ssub.s32 %s10, %s17
    %p45 = scmp.eq.s32.totalorder %s44, 0
    %s47 = sadd.s32 %s46, 1
    %s48 = scalar_select %p45, %s46, %s47
    %p51 = pneg %p45
    %p52 = scmp.eq.s32.totalorder %s10, 1
    %p53 = por %p51, %p52
    %p54 = scmp.ne.s32.totalorder %s46, %s49
    %p55 = scmp.eq.s32.totalorder %s10, 0
    %p56 = por %p54, %p55
    %p57 = scmp.ne.s32.totalorder %s46, %s49
    %p58 = scmp.eq.s32.totalorder %s15, 1
    %p59 = por %p57, %p58
    %p60 = scmp.ne.s32.totalorder %s49, %s50
    %p61 = scmp.eq.s32.totalorder %s15, 0
    %p62 = por %p60, %p61
    %p63 = scmp.ne.s32.totalorder %s49, %s50
    %p64 = scmp.eq.s32.totalorder %s16, 1
    %p65 = por %p63, %p64
    %p67 = scmp.ne.s32.totalorder %s50, %s66
    %p68 = scmp.eq.s32.totalorder %s16, 0
    %p69 = por %p67, %p68
    %s71 = sadd.s32 %s70, 1
    %p74 = scmp.eq.s32.totalorder %s10, 1
    %p75 = scmp.ne.s32.totalorder %s70, %s72
    %p76 = scmp.eq.s32.totalorder %s10, 0
    %p77 = por %p75, %p76
    %p78 = scmp.ne.s32.totalorder %s70, %s72
    %p79 = scmp.eq.s32.totalorder %s15, 1
    %p80 = por %p78, %p79
    %p81 = scmp.ne.s32.totalorder %s72, %s73
    %p82 = scmp.eq.s32.totalorder %s15, 0
    %p83 = por %p81, %p82
    %p84 = scmp.ne.s32.totalorder %s72, %s73
    %p85 = scmp.eq.s32.totalorder %s16, 1
    %p86 = por %p84, %p85
    %p88 = scmp.ne.s32.totalorder %s73, %s87
    %p89 = scmp.eq.s32.totalorder %s16, 0
    %p90 = por %p88, %p89
    %s92 = sadd.s32 %s91, 1
    %p95 = scmp.eq.s32.totalorder %s10, 1
    %p96 = scmp.ne.s32.totalorder %s91, %s93
    %p97 = scmp.eq.s32.totalorder %s10, 0
    %p98 = por %p96, %p97
    %p99 = scmp.ne.s32.totalorder %s91, %s93
    %p100 = scmp.eq.s32.totalorder %s15, 1
    %p101 = por %p99, %p100
    %p102 = scmp.ne.s32.totalorder %s93, %s94
    %p103 = scmp.eq.s32.totalorder %s15, 0
    %p104 = por %p102, %p103
    %p105 = scmp.ne.s32.totalorder %s93, %s94
    %p106 = scmp.eq.s32.totalorder %s16, 1
    %p107 = por %p105, %p106
    %p109 = scmp.ne.s32.totalorder %s94, %s108
    %p110 = scmp.eq.s32.totalorder %s16, 0
    %p111 = por %p109, %p110
    %s112 = ssub.s32 %s10, %s17
    %p113 = scmp.eq.s32.totalorder %s112, 0
    %s115 = sadd.s32 %s114, 1
    %s116 = scalar_select %p113, %s114, %s115
    %p119 = pneg %p113
    %p120 = scmp.eq.s32.totalorder %s10, 1
    %p121 = por %p119, %p120
    %p122 = scmp.ne.s32.totalorder %s114, %s117
    %p123 = scmp.eq.s32.totalorder %s10, 0
    %p124 = por %p122, %p123
    %p125 = scmp.ne.s32.totalorder %s114, %s117
    %p126 = scmp.eq.s32.totalorder %s15, 1
    %p127 = por %p125, %p126
    %p128 = scmp.ne.s32.totalorder %s117, %s118
    %p129 = scmp.eq.s32.totalorder %s15, 0
    %p130 = por %p128, %p129
    %p131 = scmp.ne.s32.totalorder %s117, %s118
    %p132 = scmp.eq.s32.totalorder %s16, 1
    %p133 = por %p131, %p132
    %p135 = scmp.ne.s32.totalorder %s118, %s134
    %p136 = scmp.eq.s32.totalorder %s16, 0
    %p137 = por %p135, %p136
    %p138 = scmp.le.s32.totalorder 1, %s10
    %p139 = scmp.lt.s32.totalorder %s10, 3
    %p140 = pnand %p138, %p139
    %p141 = pneg %p140
    // Predicated region
    $region9: #{eeg_decomposer_forward.3} parent=5 // pred_check
      _
    $region10: #{eeg_decomposer_forward.3} parent=5 // pred_check_branch
      %143 = sbr.rel (%p140) target = $region12
    $region11: #{eeg_decomposer_forward.3} parent=5 // pred_region
      %s144 = ssub.s32 %s10, 1
      // Predicated region
      $region13: #{eeg_decomposer_forward.3} parent=11 // pred_check
        %p145 = pneg %p83
      $region14: #{eeg_decomposer_forward.3} parent=11 // pred_check_branch
        %147 = sbr.rel (%p145) target = $region16
      $region15: #{eeg_decomposer_forward.3} parent=11 // pred_region
        _
      $region16: #{eeg_decomposer_forward.3} parent=11 // pred_fallthru
        _
      // Predicated region
      $region17: #{eeg_decomposer_forward.3} parent=11 // pred_check
        %p148 = pneg %p104
      $region18: #{eeg_decomposer_forward.3} parent=11 // pred_check_branch
        %150 = sbr.rel (%p148) target = $region20
      $region19: #{eeg_decomposer_forward.3} parent=11 // pred_region
        _
      $region20: #{eeg_decomposer_forward.3} parent=11 // pred_fallthru
        _
    $region12: #{eeg_decomposer_forward.3} parent=5 // pred_fallthru
      _
    %p151 = scmp.lt.s32.totalorder %s10, 2
    // Predicated region
    $region21: #{eeg_decomposer_forward.3} parent=5 // pred_check
      %p152 = pneg %p151
    $region22: #{eeg_decomposer_forward.3} parent=5 // pred_check_branch
      %154 = sbr.rel (%p152) target = $region24
    $region23: #{eeg_decomposer_forward.3} parent=5 // pred_region
      // Predicated region
      $region25: #{eeg_decomposer_forward.3} parent=23 // pred_check
        %p155 = pneg %p30
      $region26: #{eeg_decomposer_forward.3} parent=23 // pred_check_branch
        %157 = sbr.rel (%p155) target = $region28
      $region27: #{eeg_decomposer_forward.3} parent=23 // pred_region
        %p158 = scmp.lt.s32.totalorder %s10, 1
        %s159 = scalar_select %p158, %s10, 1
        %s160 = smul.addr %s159, 3
        %s161 = smul.addr %s160, 4
        %s162 = scalar_lea.vmem %s0, %s161
      $region28: #{eeg_decomposer_forward.3} parent=23 // pred_fallthru
        _
      // Predicated region
      $region29: #{eeg_decomposer_forward.3} parent=23 // pred_check
        %p163 = pneg %p56
      $region30: #{eeg_decomposer_forward.3} parent=23 // pred_check_branch
        %165 = sbr.rel (%p163) target = $region32
      $region31: #{eeg_decomposer_forward.3} parent=23 // pred_region
        %p166 = scmp.lt.s32.totalorder %s10, 1
        %s167 = scalar_select %p166, %s10, 1
        %s168 = smul.addr %s167, 3
        %s169 = smul.addr %s168, 4
        %s170 = scalar_lea.vmem %s1, %s169
      $region32: #{eeg_decomposer_forward.3} parent=23 // pred_fallthru
        _
    $region24: #{eeg_decomposer_forward.3} parent=5 // pred_fallthru
      _
    %p171 = scmp.le.s32.totalorder 1, %s10
    %p172 = scmp.lt.s32.totalorder %s10, 3
    %p173 = pnand %p171, %p172
    %p174 = pneg %p173
    // Predicated region
    $region33: #{eeg_decomposer_forward.3} parent=5 // pred_check
      _
    $region34: #{eeg_decomposer_forward.3} parent=5 // pred_check_branch
      %176 = sbr.rel (%p173) target = $region36
    $region35: #{eeg_decomposer_forward.3} parent=5 // pred_region
      %s177 = ssub.s32 %s10, 1
      %p178 = scmp.lt.s32.totalorder %s15, 1
      %s179 = scalar_select %p178, %s15, 1
      %s180 = smul.addr %s179, 3
      %s181 = smul.addr %s180, 4
      %s182 = scalar_lea.vmem %s0, %s181
      %p183 = pneg %p36
      %p184 = pneg %p33
      %p185 = scmp.lt.s32.totalorder %s15, 1
      %s186 = scalar_select %p185, %s15, 1
      %s187 = smul.addr %s186, 3
      %s188 = smul.addr %s187, 4
      %s189 = scalar_lea.vmem %s1, %s188
      %p190 = pneg %p62
      %p191 = pneg %p59
      %p192 = pneg %p83
      %p193 = pneg %p80
      %p194 = pneg %p104
      %p195 = pneg %p101
      %p196 = pneg %p130
      %p197 = pneg %p127
      %p198 = scmp.lt.s32.totalorder %s15, 1
      %s199 = scalar_select %p198, %s15, 1
      %s200 = smul.addr %s199, 2
      %s201 = smul.addr %s200, 4
      %s202 = scalar_lea.vmem %s4, %s201
      %p203 = scmp.lt.s32.totalorder %s15, 1
      %s204 = scalar_select %p203, %s15, 1
      %s205 = smul.addr %s204, 3
      %s206 = smul.addr %s205, 4
      %s207 = scalar_lea.vmem %s0, %s206
      %p208 = scmp.lt.s32.totalorder %s15, 1
      %s209 = scalar_select %p208, %s15, 1
      %s210 = smul.addr %s209, 3
      %s211 = smul.addr %s210, 4
      %s212 = scalar_lea.vmem %s1, %s211
      %p213 = scmp.lt.s32.totalorder %s15, 1
      %s214 = scalar_select %p213, %s15, 1
      %s215 = smul.addr %s214, 2
      %s216 = smul.addr %s215, 4
      %s217 = scalar_lea.vmem %s4, %s216
      %v219 = vld [vmem:[%s207] sm:$0xf]
      %v220 = vld [vmem:[%s207 + $0x4] sm:$0xf]
      %v221 = vld [vmem:[%s2] sm:$0xf]
      %v222 = vld [vmem:[%s212] sm:$0xf]
      %v223 = vld [vmem:[%s212 + $0x4] sm:$0xf]
      %s224 = scalar_lea.vmem %s2, 4
      %v225 = vld [vmem:[%s224] sm:$0xf]
      %v228 = vunpack.c.l.b16 %v222
      %v229 = vunpack.c.l.b16 %v223
      %v230 = vpack.c.b16 %v229, %v228
      %vm231 = vcmask 64512
      %v233 = vsel %vm231, %v230, 0
      %vm235 = vcmask 1043456
      %v237 = vsel %vm235, %v225, 0
      %239 = vmatprep.subr.bf16.mxu0 0
      %240 = vmatpush1.bf16.msra.mxu0 %v237
      %241 = vmatprep.subr.bf16.mxu0 0
      %242 = vmatpush1.bf16.msra.mxu0 0
      %243 = vmatprep.subr.bf16.mxu0 0
      %244 = vmatpush1.bf16.msra.mxu0 0
      %245 = vmatprep.subr.bf16.mxu0 0
      %246 = vmatpush1.bf16.msra.mxu0 0
      %247 = vmatprep.subr.bf16.mxu0 0
      %248 = vmatpush1.bf16.msra.mxu0 0
      %249 = vmatprep.subr.bf16.mxu0 0
      %250 = vmatpush1.bf16.msra.mxu0 0
      %251 = vmatprep.subr.bf16.mxu0 0
      %252 = vmatpush1.bf16.msra.mxu0 0
      %253 = vmatprep.subr.bf16.mxu0 0
      %254 = vmatpush1.bf16.msra.mxu0 0
      %255 = vmatprep.subr.bf16.mxu0 0
      %256 = vmatpush1.bf16.msra.mxu0 0
      %257 = vmatprep.subr.bf16.mxu0 0
      %258 = vmatpush1.bf16.msra.mxu0 0
      %259 = vmatprep.subr.bf16.mxu0 0
      %260 = vmatpush1.bf16.msra.mxu0 0
      %261 = vmatprep.subr.bf16.mxu0 0
      %262 = vmatpush1.bf16.msra.mxu0 0
      %263 = vmatprep.subr.bf16.mxu0 0
      %264 = vmatpush1.bf16.msra.mxu0 0
      %265 = vmatprep.subr.bf16.mxu0 0
      %266 = vmatpush1.bf16.msra.mxu0 0
      %267 = vmatprep.subr.bf16.mxu0 0
      %268 = vmatpush1.bf16.msra.mxu0 0
      %269 = vmatprep.subr.bf16.mxu0 0
      %270 = vmatpush1.bf16.msra.mxu0 0
      %271 = vmatprep.mubr.bf16.mxu0 0
      %272 = vmatmul.mubr.bf16.gmra.mrb[0].mxu0 %v233
      %v273 = vpop.f32.mrb[0].mxu0
      %v274 = vadd.f32 0.0, %v273
      %v275 = vpop.f32.mrb[0].mxu0
      %v276 = vpop.f32.mrb[0].mxu0
      %v277 = vadd.f32 0.0, %v276
      %v278 = vpop.f32.mrb[0].mxu0
      %279 = vdwg.mxu0
      %v282 = vunpack.c.l.b16 %v219
      %v283 = vunpack.c.l.b16 %v220
      %v284 = vpack.c.b16 %v283, %v282
      %v286 = vsel %vm231, %v284, 0
      %v289 = vsel %vm235, %v221, 0
      %291 = vmatprep.subr.bf16.mxu0 0
      %292 = vmatpush1.bf16.msra.mxu0 %v289
      %293 = vmatprep.subr.bf16.mxu0 0
      %294 = vmatpush1.bf16.msra.mxu0 0
      %295 = vmatprep.subr.bf16.mxu0 0
      %296 = vmatpush1.bf16.msra.mxu0 0
      %297 = vmatprep.subr.bf16.mxu0 0
      %298 = vmatpush1.bf16.msra.mxu0 0
      %299 = vmatprep.subr.bf16.mxu0 0
      %300 = vmatpush1.bf16.msra.mxu0 0
      %301 = vmatprep.subr.bf16.mxu0 0
      %302 = vmatpush1.bf16.msra.mxu0 0
      %303 = vmatprep.subr.bf16.mxu0 0
      %304 = vmatpush1.bf16.msra.mxu0 0
      %305 = vmatprep.subr.bf16.mxu0 0
      %306 = vmatpush1.bf16.msra.mxu0 0
      %307 = vmatprep.subr.bf16.mxu0 0
      %308 = vmatpush1.bf16.msra.mxu0 0
      %309 = vmatprep.subr.bf16.mxu0 0
      %310 = vmatpush1.bf16.msra.mxu0 0
      %311 = vmatprep.subr.bf16.mxu0 0
      %312 = vmatpush1.bf16.msra.mxu0 0
      %313 = vmatprep.subr.bf16.mxu0 0
      %314 = vmatpush1.bf16.msra.mxu0 0
      %315 = vmatprep.subr.bf16.mxu0 0
      %316 = vmatpush1.bf16.msra.mxu0 0
      %317 = vmatprep.subr.bf16.mxu0 0
      %318 = vmatpush1.bf16.msra.mxu0 0
      %319 = vmatprep.subr.bf16.mxu0 0
      %320 = vmatpush1.bf16.msra.mxu0 0
      %321 = vmatprep.subr.bf16.mxu0 0
      %322 = vmatpush1.bf16.msra.mxu0 0
      %323 = vmatprep.mubr.bf16.mxu0 0
      %324 = vmatmul.mubr.bf16.gmra.mrb[0].mxu0 %v286
      %v325 = vpop.f32.mrb[0].mxu0
      %v326 = vadd.f32 %v274, %v325
      %v327 = vpop.f32.mrb[0].mxu0
      %v328 = vpop.f32.mrb[0].mxu0
      %v329 = vadd.f32 %v277, %v328
      %v330 = vpop.f32.mrb[0].mxu0
      %331 = vdwg.mxu0
      %v332 = vld [vmem:[%s207] sm:$0xf]
      %v333 = vld [vmem:[%s207 + $0x4] sm:$0xf]
      %v334 = vld [vmem:[%s207 + $0x8] sm:$0x1]
      %s335 = scalar_lea.vmem %s2, 8
      %v336 = vld [vmem:[%s335] sm:$0xf]
      %v340 = vunpack.c.l.b16 %v332
      %v341 = vunpack.c.l.b16 %v333
      %v342 = vunpack.c.l.b16 %v334
      %v343 = vpack.c.b16 %v341, %v340
      %v344 = vpack.c.b16 %v342, %v342
      %vm345 = vsmask.f32 7424
      %v347 = vshrl.u32 %v343, 16
      %v349 = vshll.u32 %v343, 16
      %v351 = vrot.slane %v349, 1
      %v352 = vor.u32 %v347, %v351
      %v354 = vshll.u32 %v344, 16
      %v356 = vrot.slane %v354, 1
      %v357 = vsel %vm345, %v352, %v356
      %v359 = vsel %vm231, %v357, 0
      %v362 = vsel %vm235, %v336, 0
      %364 = vmatprep.subr.bf16.mxu0 0
      %365 = vmatpush1.bf16.msra.mxu0 %v362
      %366 = vmatprep.subr.bf16.mxu0 0
      %367 = vmatpush1.bf16.msra.mxu0 0
      %368 = vmatprep.subr.bf16.mxu0 0
      %369 = vmatpush1.bf16.msra.mxu0 0
      %370 = vmatprep.subr.bf16.mxu0 0
      %371 = vmatpush1.bf16.msra.mxu0 0
      %372 = vmatprep.subr.bf16.mxu0 0
      %373 = vmatpush1.bf16.msra.mxu0 0
      %374 = vmatprep.subr.bf16.mxu0 0
      %375 = vmatpush1.bf16.msra.mxu0 0
      %376 = vmatprep.subr.bf16.mxu0 0
      %377 = vmatpush1.bf16.msra.mxu0 0
      %378 = vmatprep.subr.bf16.mxu0 0
      %379 = vmatpush1.bf16.msra.mxu0 0
      %380 = vmatprep.subr.bf16.mxu0 0
      %381 = vmatpush1.bf16.msra.mxu0 0
      %382 = vmatprep.subr.bf16.mxu0 0
      %383 = vmatpush1.bf16.msra.mxu0 0
      %384 = vmatprep.subr.bf16.mxu0 0
      %385 = vmatpush1.bf16.msra.mxu0 0
      %386 = vmatprep.subr.bf16.mxu0 0
      %387 = vmatpush1.bf16.msra.mxu0 0
      %388 = vmatprep.subr.bf16.mxu0 0
      %389 = vmatpush1.bf16.msra.mxu0 0
      %390 = vmatprep.subr.bf16.mxu0 0
      %391 = vmatpush1.bf16.msra.mxu0 0
      %392 = vmatprep.subr.bf16.mxu0 0
      %393 = vmatpush1.bf16.msra.mxu0 0
      %394 = vmatprep.subr.bf16.mxu0 0
      %395 = vmatpush1.bf16.msra.mxu0 0
      %396 = vmatprep.mubr.bf16.mxu0 0
      %397 = vmatmul.mubr.bf16.gmra.mrb[0].mxu0 %v359
      %v398 = vpop.f32.mrb[0].mxu0
      %v399 = vadd.f32 0.0, %v398
      %v400 = vpop.f32.mrb[0].mxu0
      %v401 = vpop.f32.mrb[0].mxu0
      %v402 = vadd.f32 0.0, %v401
      %v403 = vpop.f32.mrb[0].mxu0
      %404 = vdwg.mxu0
      %v405 = vadd.f32 %v326, %v399
      %v406 = vadd.f32 %v329, %v402
      %v407 = vld [vmem:[%s212] sm:$0xf]
      %v408 = vld [vmem:[%s212 + $0x4] sm:$0xf]
      %v409 = vld [vmem:[%s212 + $0x8] sm:$0x1]
      %s410 = scalar_lea.vmem %s2, 12
      %v411 = vld [vmem:[%s410] sm:$0xf]
      %v415 = vunpack.c.l.b16 %v407
      %v416 = vunpack.c.l.b16 %v408
      %v417 = vunpack.c.l.b16 %v409
      %v418 = vpack.c.b16 %v416, %v415
      %v419 = vpack.c.b16 %v417, %v417
      %v421 = vshrl.u32 %v418, 16
      %v423 = vshll.u32 %v418, 16
      %v425 = vrot.slane %v423, 1
      %v426 = vor.u32 %v421, %v425
      %v428 = vshll.u32 %v419, 16
      %v430 = vrot.slane %v428, 1
      %v431 = vsel %vm345, %v426, %v430
      %v433 = vsel %vm231, %v431, 0
      %v436 = vsel %vm235, %v411, 0
      %438 = vmatprep.subr.bf16.mxu0 0
      %439 = vmatpush1.bf16.msra.mxu0 %v436
      %440 = vmatprep.subr.bf16.mxu0 0
      %441 = vmatpush1.bf16.msra.mxu0 0
      %442 = vmatprep.subr.bf16.mxu0 0
      %443 = vmatpush1.bf16.msra.mxu0 0
      %444 = vmatprep.subr.bf16.mxu0 0
      %445 = vmatpush1.bf16.msra.mxu0 0
      %446 = vmatprep.subr.bf16.mxu0 0
      %447 = vmatpush1.bf16.msra.mxu0 0
      %448 = vmatprep.subr.bf16.mxu0 0
      %449 = vmatpush1.bf16.msra.mxu0 0
      %450 = vmatprep.subr.bf16.mxu0 0
      %451 = vmatpush1.bf16.msra.mxu0 0
      %452 = vmatprep.subr.bf16.mxu0 0
      %453 = vmatpush1.bf16.msra.mxu0 0
      %454 = vmatprep.subr.bf16.mxu0 0
      %455 = vmatpush1.bf16.msra.mxu0 0
      %456 = vmatprep.subr.bf16.mxu0 0
      %457 = vmatpush1.bf16.msra.mxu0 0
      %458 = vmatprep.subr.bf16.mxu0 0
      %459 = vmatpush1.bf16.msra.mxu0 0
      %460 = vmatprep.subr.bf16.mxu0 0
      %461 = vmatpush1.bf16.msra.mxu0 0
      %462 = vmatprep.subr.bf16.mxu0 0
      %463 = vmatpush1.bf16.msra.mxu0 0
      %464 = vmatprep.subr.bf16.mxu0 0
      %465 = vmatpush1.bf16.msra.mxu0 0
      %466 = vmatprep.subr.bf16.mxu0 0
      %467 = vmatpush1.bf16.msra.mxu0 0
      %468 = vmatprep.subr.bf16.mxu0 0
      %469 = vmatpush1.bf16.msra.mxu0 0
      %470 = vmatprep.mubr.bf16.mxu0 0
      %471 = vmatmul.mubr.bf16.gmra.mrb[0].mxu0 %v433
      %v472 = vpop.f32.mrb[0].mxu0
      %v473 = vadd.f32 0.0, %v472
      %v474 = vpop.f32.mrb[0].mxu0
      %v475 = vpop.f32.mrb[0].mxu0
      %v476 = vadd.f32 0.0, %v475
      %v477 = vpop.f32.mrb[0].mxu0
      %478 = vdwg.mxu0
      %v479 = vadd.f32 %v405, %v473
      %v480 = vadd.f32 %v406, %v476
      %v481 = vld [vmem:[%s207] sm:$0xe]
      %s482 = scalar_lea.vmem %s2, 16
      %v483 = vld [vmem:[%s482] sm:$0xf]
      %v485 = vunpack.c.l.b16 %v481
      %v486 = vpack.c.b16 %v341, %v485
      %vm487 = vcmask 1046528
      %v488 = vrot.slane %v486, 1
      %v489 = vrot.slane %v344, 1
      %v490 = vsel %vm487, %v488, %v489
      %v492 = vsel %vm231, %v490, 0
      %v495 = vsel %vm235, %v483, 0
      %497 = vmatprep.subr.bf16.mxu0 0
      %498 = vmatpush1.bf16.msra.mxu0 %v495
      %499 = vmatprep.subr.bf16.mxu0 0
      %500 = vmatpush1.bf16.msra.mxu0 0
      %501 = vmatprep.subr.bf16.mxu0 0
      %502 = vmatpush1.bf16.msra.mxu0 0
      %503 = vmatprep.subr.bf16.mxu0 0
      %504 = vmatpush1.bf16.msra.mxu0 0
      %505 = vmatprep.subr.bf16.mxu0 0
      %506 = vmatpush1.bf16.msra.mxu0 0
      %507 = vmatprep.subr.bf16.mxu0 0
      %508 = vmatpush1.bf16.msra.mxu0 0
      %509 = vmatprep.subr.bf16.mxu0 0
      %510 = vmatpush1.bf16.msra.mxu0 0
      %511 = vmatprep.subr.bf16.mxu0 0
      %512 = vmatpush1.bf16.msra.mxu0 0
      %513 = vmatprep.subr.bf16.mxu0 0
      %514 = vmatpush1.bf16.msra.mxu0 0
      %515 = vmatprep.subr.bf16.mxu0 0
      %516 = vmatpush1.bf16.msra.mxu0 0
      %517 = vmatprep.subr.bf16.mxu0 0
      %518 = vmatpush1.bf16.msra.mxu0 0
      %519 = vmatprep.subr.bf16.mxu0 0
      %520 = vmatpush1.bf16.msra.mxu0 0
      %521 = vmatprep.subr.bf16.mxu0 0
      %522 = vmatpush1.bf16.msra.mxu0 0
      %523 = vmatprep.subr.bf16.mxu0 0
      %524 = vmatpush1.bf16.msra.mxu0 0
      %525 = vmatprep.subr.bf16.mxu0 0
      %526 = vmatpush1.bf16.msra.mxu0 0
      %527 = vmatprep.subr.bf16.mxu0 0
      %528 = vmatpush1.bf16.msra.mxu0 0
      %529 = vmatprep.mubr.bf16.mxu0 0
      %530 = vmatmul.mubr.bf16.gmra.mrb[0].mxu0 %v492
      %v531 = vpop.f32.mrb[0].mxu0
      %v532 = vadd.f32 0.0, %v531
      %v533 = vpop.f32.mrb[0].mxu0
      %v534 = vpop.f32.mrb[0].mxu0
      %v535 = vadd.f32 0.0, %v534
      %v536 = vpop.f32.mrb[0].mxu0
      %537 = vdwg.mxu0
      %v538 = vadd.f32 %v479, %v532
      %v539 = vadd.f32 %v480, %v535
      %v540 = vld [vmem:[%s3] sm:$0x1]
      %v542 = vlaneseq
      %v543 = vshrl.u32 %v542, 7
      %v544 = vsub.s32 0, %v543
      %v545 = vrot.slane %v540, %v544
      %v547 = vadd.f32 %v538, %v545
      %v548 = vadd.f32 %v539, %v545
      %v549 = vmul.f32 %v547, 0.5
      %v550 = vmul.f32 %v548, 0.5
      %v551 = vmul.f32 %v547, 0.044715
      %v552 = vmul.f32 %v548, 0.044715
      %v553 = vmul.f32 %v551, %v547
      %v554 = vmul.f32 %v552, %v548
      %v555 = vmul.f32 %v553, %v547
      %v556 = vmul.f32 %v554, %v548
      %v557 = vadd.f32 %v547, %v555
      %v558 = vadd.f32 %v548, %v556
      %v559 = vmul.f32 %v557, 0.7978846
      %v560 = vmul.f32 %v558, 0.7978846
      %v561 = vtanh.pop %v559
      %v562 = vtanh.pop %v560
      %v563 = vadd.f32 %v561, 1.0
      %v564 = vadd.f32 %v562, 1.0
      %v565 = vmul.f32 %v549, %v563
      %v566 = vmul.f32 %v550, %v564
      %v567 = vpack.c.bf16 %v566, %v565
      %v569 = vunpack.c.l.b16 %v567
      %v570 = vunpack.c.h.b16 %v567
      %v571 = vpack.c.b16 %v569, %v569
      %v572 = vpack.c.b16 %v570, %v570
      %vm575 = vcmask 125952
      %576 = vst.msk [vmem:[%s217] sm:$0xf] %vm575, %v571
      %577 = vst.msk [vmem:[%s217 + $0x4] sm:$0xf] %vm575, %v572
      %p578 = scmp.lt.s32.totalorder %s15, 1
      %s579 = scalar_select %p578, %s15, 1
      %s580 = smul.addr %s579, 2
      %s581 = smul.addr %s580, 4
      %s582 = scalar_lea.vmem %s4, %s581
      // Predicated region
      $region37: #{eeg_decomposer_forward.3} parent=35 // pred_check
        %p583 = pneg %p127
      $region38: #{eeg_decomposer_forward.3} parent=35 // pred_check_branch
        %585 = sbr.rel (%p583) target = $region40
      $region39: #{eeg_decomposer_forward.3} parent=35 // pred_region
        _
      $region40: #{eeg_decomposer_forward.3} parent=35 // pred_fallthru
        _
    $region36: #{eeg_decomposer_forward.3} parent=5 // pred_fallthru
      _
    %p586 = scmp.le.s32.totalorder 2, %s10
    // Predicated region
    $region41: #{eeg_decomposer_forward.3} parent=5 // pred_check
      %p587 = pneg %p586
    $region42: #{eeg_decomposer_forward.3} parent=5 // pred_check_branch
      %589 = sbr.rel (%p587) target = $region44
    $region43: #{eeg_decomposer_forward.3} parent=5 // pred_region
      %s590 = ssub.s32 %s10, 2
      // Predicated region
      $region45: #{eeg_decomposer_forward.3} parent=43 // pred_check
        %p591 = pneg %p133
      $region46: #{eeg_decomposer_forward.3} parent=43 // pred_check_branch
        %593 = sbr.rel (%p591) target = $region48
      $region47: #{eeg_decomposer_forward.3} parent=43 // pred_region
        %p594 = scmp.lt.s32.totalorder %s16, 1
        %s595 = scalar_select %p594, %s16, 1
        %s596 = smul.addr %s595, 2
        %s597 = smul.addr %s596, 4
        %s598 = scalar_lea.vmem %s4, %s597
      $region48: #{eeg_decomposer_forward.3} parent=43 // pred_fallthru
        _
    $region44: #{eeg_decomposer_forward.3} parent=5 // pred_fallthru
      _
  $region6: #{eeg_decomposer_forward.3} parent=0 // loop_footer
    %s14 = sadd.s32 1, %s10
  $region7: #{eeg_decomposer_forward.3} parent=0 // loop_footer_branch
    %9 = sbr.rel target = $region3
  $region8: #{eeg_decomposer_forward.3} parent=0 // loop_exit
    _

</llo_original>
